<compile_context>
chip_gen: v6e
topology: v6e:2x2x1
jax: 0.10.0
libtpu: 0.0.40
codegen_flags: <defaults>
</compile_context>

<pallas_src>
import jax
import jax.numpy as jnp
from jax import lax
from jax.experimental import pallas as pl
from jax.experimental.pallas import tpu as pltpu

# ---------------- static configuration ----------------
B = 8              # batch size
H = 32             # num_hidden (sender hidden == receiver output == fc input)
L = 8              # max message length
V = 16             # vocab size (power of two)
LV = L * V         # 128 -> lane-dense message width
EOS_ID = 0         # sender.eos_id
C = 8              # num classes for each of the 5 image properties (power of two)
NUM_PROPS = 5
FC = NUM_PROPS * C # 40 fused fc-head lanes
K = 3              # number of distractors
MULTI_TASK_LAMBDA = 0.5

assert (V & (V - 1)) == 0 and (C & (C - 1)) == 0, "V and C must be powers of two"
assert (K + 1) * H == LV == 128, "lane-dense packing assumes 128-lane tiles"

# weight-slab row layout (lane width = 128, bf16)
ROW_WSEND = 0          # rows [0, 32)   : w_sender              (H, LV)
ROW_WRECV = H          # rows [32, 64)  : w_recv^T              (H, LV)
ROW_FCW = 2 * H        # rows [64, 96)  : fc_w  in lanes [0, 40)
ROW_BIAS = 3 * H       # row 96         : b_recv lanes [0, 32), fc_b lanes [64, 104)
FCB_LANE = 64
SLAB_ROWS = 104        # 97 used rows padded up to a multiple of 8

_VMEM = pltpu.MemorySpace.VMEM
_f32 = jnp.float32


# ---------------- fused forward kernel ----------------
def _fused_forward_kernel(cands_ref, idata_ref, slab_ref, msg_ref, stats_ref):
    inv_b = 1.0 / B

    cands = cands_ref[...]                                     # (B, 128): [target|d0|d1|d2]
    target = cands[:, 0:H]                                     # (B, H) static lane slice

    # constant weights: static slices of the bf16 slab, cast once to f32
    w_send = slab_ref[ROW_WSEND:ROW_WSEND + H, :].astype(_f32)             # (H, LV)
    w_recv_t = slab_ref[ROW_WRECV:ROW_WRECV + H, :].astype(_f32)           # (H, LV) == w_recv^T
    fc_w = slab_ref[ROW_FCW:ROW_FCW + H, 0:FC].astype(_f32)                # (H, FC)
    b_recv = slab_ref[ROW_BIAS:ROW_BIAS + 1, 0:H].astype(_f32)             # (1, H)
    fc_b = slab_ref[ROW_BIAS:ROW_BIAS + 1, FCB_LANE:FCB_LANE + FC].astype(_f32)  # (1, FC)

    meta = idata_ref[:, 0:NUM_PROPS]                           # (B, 5) int32
    lengths = idata_ref[:, NUM_PROPS:NUM_PROPS + 1]            # (B, 1) int32

    # ---- sender stand-in: matmul + per-token softmax, lane-dense (B, L*V) ----
    # TODO(synk): replace with faithful ShapesSender RNN once its definition is available.
    logits = jnp.dot(target, w_send, preferred_element_type=_f32)          # (B, LV)
    row_max = jnp.max(logits, axis=1, keepdims=True)           # row-wide stabilizer
    e = jnp.exp(logits - row_max)
    # block-diag ones (group = V), generated in-kernel -> per-token denominator on the MXU
    li = lax.broadcasted_iota(jnp.int32, (LV, LV), 0)
    lj = lax.broadcasted_iota(jnp.int32, (LV, LV), 1)
    seg_v = ((li >> 4) == (lj >> 4)).astype(_f32)              # (LV, LV)
    denom = jnp.maximum(jnp.dot(e, seg_v, preferred_element_type=_f32), 1e-30)  # clamp: no NaN on underflow
    probs = e * pl.reciprocal(denom, approx=True)              # divide on the idle EUP slot

    # ---- _pad (training path), built directly in the lane-dense layout ----
    lane = lax.broadcasted_iota(jnp.int32, (B, LV), 1)
    voc = lane & (V - 1)                                       # lane % V
    keep = (lane < lengths * V).astype(_f32)                   # (lane // V) < length
    eos = (voc == EOS_ID).astype(_f32)
    padded = probs * keep + eos * (1.0 - keep)
    msg_ref[...] = padded                                      # one dense (8,128) store

    # ---- baseline receiver stand-in (w_recv stored transposed: NT matmul) ----
    # TODO(synk): replace with faithful ShapesReceiver RNN once its definition is available.
    r = jnp.tanh(lax.dot_general(padded, w_recv_t, (((1,), (1,)), ((), ())),
                                 preferred_element_type=_f32) + b_recv)    # (B, H)

    # ---- inference step: one matmul for all 5 heads, vectorized CE / accuracy ----
    logits_all = jnp.dot(r, fc_w, preferred_element_type=_f32) + fc_b      # (B, FC)
    stab = jnp.max(logits_all, axis=1, keepdims=True)
    ef = jnp.exp(logits_all - stab)                            # one exp over all 40 lanes
    gi = lax.broadcasted_iota(jnp.int32, (FC, FC), 0)
    gj = lax.broadcasted_iota(jnp.int32, (FC, FC), 1)
    seg_c = ((gi >> 3) == (gj >> 3)).astype(_f32)              # block-diag ones, group = C
    denom_c = jnp.maximum(jnp.dot(ef, seg_c, preferred_element_type=_f32), 1e-30)
    lse = jnp.log(denom_c) + stab                              # per-lane group log-sum-exp

    # per-lane target class of that lane's property group: meta @ spread
    si = lax.broadcasted_iota(jnp.int32, (NUM_PROPS, FC), 0)
    sj = lax.broadcasted_iota(jnp.int32, (NUM_PROPS, FC), 1)
    spread = (si == (sj >> 3)).astype(_f32)                    # (5, FC)
    t_lane = jnp.dot(meta.astype(_f32), spread, preferred_element_type=_f32)   # (B, FC)
    cls_lane = (lax.broadcasted_iota(jnp.int32, (B, FC), 1) & (C - 1)).astype(_f32)
    onehot = (cls_lane == t_lane).astype(_f32)                 # exact 0/1

    ce_contrib = onehot * (lse - logits_all)                   # nonzero only at target lane
    # target logit broadcast across its group (reuse seg_c); exclude the target lane
    # from the "beats" count so matmul rounding can't make the target beat itself
    tval_lane = jnp.dot(onehot * logits_all, seg_c, preferred_element_type=_f32)
    gt = (logits_all > tval_lane).astype(_f32)
    eq_first = jnp.logical_and(logits_all == tval_lane, cls_lane < t_lane).astype(_f32)
    beats = (1.0 - onehot) * (gt + eq_first)                   # argmax-first tie-break

    ci = lax.broadcasted_iota(jnp.int32, (FC, NUM_PROPS), 0)
    cj = lax.broadcasted_iota(jnp.int32, (FC, NUM_PROPS), 1)
    collapse = ((ci >> 3) == cj).astype(_f32)                  # (FC, 5): group-sum collapse
    ce_bp = jnp.dot(ce_contrib, collapse, preferred_element_type=_f32)     # (B, 5)
    beats_bp = jnp.dot(beats, collapse, preferred_element_type=_f32)       # (B, 5)
    corr_bp = (beats_bp == 0.0).astype(_f32)
    ce5 = jnp.sum(ce_bp, axis=0, keepdims=True) * inv_b        # (1, 5) per-property mean CE
    acc5 = jnp.sum(corr_bp, axis=0, keepdims=True) * inv_b     # (1, 5) per-property accuracy
    loss = jnp.sum(ce5, axis=1, keepdims=True)                 # (1, 1) sum over properties
    disabled_loss = loss                                       # disabled_properties is None

    # ---- baseline referential game on lane-dense candidates (raw scores; exp monotone) ----
    ti = lax.broadcasted_iota(jnp.int32, (H, LV), 0)
    tj = lax.broadcasted_iota(jnp.int32, (H, LV), 1)
    tile4 = (ti == (tj & (H - 1))).astype(_f32)                # (H, 128): replicate r into 4 groups
    r4 = jnp.dot(r, tile4, preferred_element_type=_f32)        # (B, 128)
    ki = lax.broadcasted_iota(jnp.int32, (LV, K + 1), 0)
    kj = lax.broadcasted_iota(jnp.int32, (LV, K + 1), 1)
    pick = ((ki >> 5) == kj).astype(_f32)                      # (128, K+1) group-32 collapse
    scores = jnp.dot(cands * r4, pick, preferred_element_type=_f32)        # (B, K+1); col 0 = target
    ts = scores[:, 0:1]                                        # (B, 1)
    ds = scores[:, 1:K + 1]                                    # (B, K)
    hinge = jnp.sum(jnp.maximum(0.0, 1.0 - ts + ds), axis=1, keepdims=True)
    corr = (ts >= jnp.max(ds, axis=1, keepdims=True)).astype(_f32)  # first-max tie-break -> target wins
    baseline_mean_loss = jnp.sum(hinge, axis=0, keepdims=True) * inv_b     # (1, 1)
    baseline_acc = jnp.sum(corr, axis=0, keepdims=True) * inv_b            # (1, 1)

    final_loss = MULTI_TASK_LAMBDA * loss + (1.0 - MULTI_TASK_LAMBDA) * baseline_mean_loss

    # ---- pack ALL reduced stats into one (1, 16) store ----
    # lanes: [0:5]=inference losses, [5:10]=inference accuracies,
    #        10=final_loss, 11=disabled_loss, 12=baseline_mean_loss, 13=baseline_accuracy
    pi = lax.broadcasted_iota(jnp.int32, (NUM_PROPS, 16), 0)
    pj = lax.broadcasted_iota(jnp.int32, (NUM_PROPS, 16), 1)
    put_ce = (pj == pi).astype(_f32)
    put_acc = (pj == pi + NUM_PROPS).astype(_f32)
    out_lane = lax.broadcasted_iota(jnp.int32, (1, 16), 1)
    stats_ref[...] = (jnp.dot(ce5, put_ce, preferred_element_type=_f32)
                      + jnp.dot(acc5, put_acc, preferred_element_type=_f32)
                      + final_loss * (out_lane == 10).astype(_f32)
                      + disabled_loss * (out_lane == 11).astype(_f32)
                      + baseline_mean_loss * (out_lane == 12).astype(_f32)
                      + baseline_acc * (out_lane == 13).astype(_f32))


# ---------------- constant-weight packing (build ONCE, outside the step) ----------------
def pack_shapes_trainer_weights(params):
    slab = jnp.zeros((SLAB_ROWS, LV), jnp.float32)
    slab = slab.at[ROW_WSEND:ROW_WSEND + H, :].set(params["w_sender"])
    slab = slab.at[ROW_WRECV:ROW_WRECV + H, :].set(params["w_recv"].T)
    fc_w_flat = jnp.transpose(params["fc_w"], (1, 0, 2)).reshape(H, FC)
    slab = slab.at[ROW_FCW:ROW_FCW + H, 0:FC].set(fc_w_flat)
    slab = slab.at[ROW_BIAS, 0:H].set(params["b_recv"].reshape(H))
    slab = slab.at[ROW_BIAS, FCB_LANE:FCB_LANE + FC].set(params["fc_b"].reshape(FC))
    return slab.astype(jnp.bfloat16)     # halves weight DMA bytes; matmuls accumulate in f32


# ---------------- wrapper: ShapesTrainer.forward (multi_task branch) ----------------
def shapes_trainer_forward(target, distractors, meta_data, lengths, w_slab):
    # lane-dense candidate pack: [target | d0 | d1 | d2] -> (B, 128)
    cands = jnp.concatenate([target] + list(distractors), axis=1).astype(_f32)
    # meta (lanes 0:5) + message lengths (lane 5) folded into one int32 operand
    idata = jnp.concatenate([meta_data.astype(jnp.int32),
                             lengths.reshape(B, 1).astype(jnp.int32),
                             jnp.zeros((B, 2), jnp.int32)], axis=1)        # (B, 8)

    msgs, stats = pl.pallas_call(
        _fused_forward_kernel,
        out_shape=(jax.ShapeDtypeStruct((B, LV), _f32),        # messages, lane-dense
                   jax.ShapeDtypeStruct((1, 16), _f32)),       # packed reduced stats
        in_specs=[pl.BlockSpec(memory_space=_VMEM)] * 3,
        out_specs=(pl.BlockSpec(memory_space=_VMEM),
                   pl.BlockSpec(memory_space=_VMEM)),
    )(cands, idata, w_slab)

    messages = msgs.reshape(B, L, V)
    inference_losses = stats[0, 0:NUM_PROPS]
    inference_accuracies = stats[0, NUM_PROPS:2 * NUM_PROPS]
    final_loss = stats[0, 10]
    disabled_loss = stats[0, 11]
    baseline_mean_loss = stats[0, 12]
    baseline_accuracy = stats[0, 13]

    # hidden_sender_parameters / hidden_receiver_parameters belong to the (unavailable)
    # sender / receiver submodules; returned as None placeholders.
    return (final_loss,
            disabled_loss,
            (inference_losses, baseline_mean_loss),
            (inference_accuracies, baseline_accuracy),
            messages,
            None,
            None)


if __name__ == "__main__":
    key = jax.random.PRNGKey(0)
    ks = jax.random.split(key, 8)

    target = jax.random.normal(ks[0], (B, H), jnp.float32)
    distractors = [jax.random.normal(ks[1 + k], (B, H), jnp.float32) for k in range(K)]
    meta_data = jax.random.randint(ks[4], (B, NUM_PROPS), 0, C, dtype=jnp.int32)

    params = dict(
        w_sender=0.1 * jax.random.normal(ks[5], (H, LV), jnp.float32),
        w_recv=0.1 * jax.random.normal(ks[6], (LV, H), jnp.float32),
        b_recv=jnp.zeros((H,), jnp.float32),
        fc_w=0.1 * jax.random.normal(ks[7], (NUM_PROPS, H, C), jnp.float32),
        fc_b=jnp.zeros((NUM_PROPS, C), jnp.float32),
    )
    lengths = jax.random.randint(jax.random.PRNGKey(1), (B,), 1, L + 1, dtype=jnp.int32)

    # pre-pack constant weights ONCE, outside the (jitted) step
    w_slab = pack_shapes_trainer_weights(params)

    fwd = jax.jit(shapes_trainer_forward)
    out = fwd(target, distractors, meta_data, lengths, w_slab)
    jax.block_until_ready(jax.tree_util.tree_leaves(out))
    print("KERNEL_OK")
</pallas_src>

<mosaic_0001>
module attributes {stable_mosaic.version = 11 : i64} {
  func.func @_fused_forward_kernel(%arg0: memref<8x128xf32, #tpu.memory_space<vmem>>, %arg1: memref<8x8xi32, #tpu.memory_space<vmem>>, %arg2: memref<104x128xbf16, #tpu.memory_space<vmem>>, %arg3: memref<8x128xf32, #tpu.memory_space<vmem>>, %arg4: memref<1x16xf32, #tpu.memory_space<vmem>>) attributes {dimension_semantics = [], scalar_prefetch = 0 : i64, scratch_operands = 0 : i64, tpu.core_type = #tpu.core_type<tc>} {
    %c0 = arith.constant 0 : index
    %c0_0 = arith.constant 0 : index
    %0 = vector.load %arg0[%c0, %c0_0] : memref<8x128xf32, #tpu.memory_space<vmem>>, vector<8x128xf32>
    %1 = vector.extract_strided_slice %0 {offsets = [0, 0], sizes = [8, 32], strides = [1, 1]} : vector<8x128xf32> to vector<8x32xf32>
    %c0_1 = arith.constant 0 : index
    %c0_2 = arith.constant 0 : index
    %2 = vector.load %arg2[%c0_1, %c0_2] : memref<104x128xbf16, #tpu.memory_space<vmem>>, vector<32x128xbf16>
    %3 = arith.extf %2 : vector<32x128xbf16> to vector<32x128xf32>
    %c32 = arith.constant 32 : index
    %c0_3 = arith.constant 0 : index
    %4 = vector.load %arg2[%c32, %c0_3] : memref<104x128xbf16, #tpu.memory_space<vmem>>, vector<32x128xbf16>
    %5 = arith.extf %4 : vector<32x128xbf16> to vector<32x128xf32>
    %c64 = arith.constant 64 : index
    %c0_4 = arith.constant 0 : index
    %6 = vector.load %arg2[%c64, %c0_4] : memref<104x128xbf16, #tpu.memory_space<vmem>>, vector<32x40xbf16>
    %7 = arith.extf %6 : vector<32x40xbf16> to vector<32x40xf32>
    %c96 = arith.constant 96 : index
    %c0_5 = arith.constant 0 : index
    %8 = vector.load %arg2[%c96, %c0_5] : memref<104x128xbf16, #tpu.memory_space<vmem>>, vector<1x32xbf16>
    %9 = arith.extf %8 : vector<1x32xbf16> to vector<1x32xf32>
    %c96_6 = arith.constant 96 : index
    %c64_7 = arith.constant 64 : index
    %10 = vector.load %arg2[%c96_6, %c64_7] : memref<104x128xbf16, #tpu.memory_space<vmem>>, vector<1x40xbf16>
    %11 = arith.extf %10 : vector<1x40xbf16> to vector<1x40xf32>
    %c0_8 = arith.constant 0 : index
    %c0_9 = arith.constant 0 : index
    %12 = vector.load %arg1[%c0_8, %c0_9] : memref<8x8xi32, #tpu.memory_space<vmem>>, vector<8x5xi32>
    %c0_10 = arith.constant 0 : index
    %c5 = arith.constant 5 : index
    %13 = vector.load %arg1[%c0_10, %c5] : memref<8x8xi32, #tpu.memory_space<vmem>>, vector<8x1xi32>
    %cst = arith.constant dense<0.000000e+00> : vector<8x128xf32>
    %14 = tpu.matmul %1, %3, %cst {dimension_numbers = #tpu.dot_dimension_numbers<[1], [0], [0], [1], [0, 0, 1, 1], [], []>} : vector<8x32xf32>, vector<32x128xf32>, vector<8x128xf32> -> vector<8x128xf32>
    %cst_11 = arith.constant dense<0xFF800000> : vector<8xf32>
    %15 = vector.multi_reduction <maximumf>, %14, %cst_11 [1] : vector<8x128xf32> to vector<8xf32>
    %16 = vector.shape_cast %15 : vector<8xf32> to vector<8x1xf32>
    %17 = vector.broadcast %16 : vector<8x1xf32> to vector<8x128xf32>
    %18 = arith.subf %14, %17 : vector<8x128xf32>
    %19 = math.exp %18 : vector<8x128xf32>
    %20 = tpu.iota {dimensions = array<i32: 0>} : vector<128x128xi32>
    %21 = tpu.iota {dimensions = array<i32: 1>} : vector<128x128xi32>
    %c4_i32 = arith.constant 4 : i32
    %22 = vector.broadcast %c4_i32 : i32 to vector<128x128xi32>
    %23 = arith.shrsi %20, %22 : vector<128x128xi32>
    %c4_i32_12 = arith.constant 4 : i32
    %24 = vector.broadcast %c4_i32_12 : i32 to vector<128x128xi32>
    %25 = arith.shrsi %21, %24 : vector<128x128xi32>
    %26 = arith.cmpi eq, %23, %25 : vector<128x128xi32>
    %27 = arith.extui %26 : vector<128x128xi1> to vector<128x128xi32>
    %28 = arith.sitofp %27 : vector<128x128xi32> to vector<128x128xf32>
    %cst_13 = arith.constant dense<0.000000e+00> : vector<8x128xf32>
    %29 = tpu.matmul %19, %28, %cst_13 {dimension_numbers = #tpu.dot_dimension_numbers<[1], [0], [0], [1], [0, 0, 1, 1], [], []>} : vector<8x128xf32>, vector<128x128xf32>, vector<8x128xf32> -> vector<8x128xf32>
    %cst_14 = arith.constant 1.000000e-30 : f32
    %30 = vector.broadcast %cst_14 : f32 to vector<8x128xf32>
    %31 = arith.maximumf %29, %30 : vector<8x128xf32>
    %32 = tpu.reciprocal %31 {approx = true} : vector<8x128xf32> -> vector<8x128xf32>
    %33 = arith.mulf %19, %32 : vector<8x128xf32>
    %34 = tpu.iota {dimensions = array<i32: 1>} : vector<8x128xi32>
    %c15_i32 = arith.constant 15 : i32
    %35 = vector.broadcast %c15_i32 : i32 to vector<8x128xi32>
    %36 = arith.andi %34, %35 : vector<8x128xi32>
    %c16_i32 = arith.constant 16 : i32
    %37 = vector.broadcast %c16_i32 : i32 to vector<8x1xi32>
    %38 = arith.muli %13, %37 : vector<8x1xi32>
    %39 = vector.broadcast %38 : vector<8x1xi32> to vector<8x128xi32>
    %40 = arith.cmpi slt, %34, %39 : vector<8x128xi32>
    %41 = arith.extui %40 : vector<8x128xi1> to vector<8x128xi32>
    %42 = arith.sitofp %41 : vector<8x128xi32> to vector<8x128xf32>
    %c0_i32 = arith.constant 0 : i32
    %43 = vector.broadcast %c0_i32 : i32 to vector<8x128xi32>
    %44 = arith.cmpi eq, %36, %43 : vector<8x128xi32>
    %45 = arith.extui %44 : vector<8x128xi1> to vector<8x128xi32>
    %46 = arith.sitofp %45 : vector<8x128xi32> to vector<8x128xf32>
    %47 = arith.mulf %33, %42 : vector<8x128xf32>
    %cst_15 = arith.constant 1.000000e+00 : f32
    %48 = vector.broadcast %cst_15 : f32 to vector<8x128xf32>
    %49 = arith.subf %48, %42 : vector<8x128xf32>
    %50 = arith.mulf %46, %49 : vector<8x128xf32>
    %51 = arith.addf %47, %50 : vector<8x128xf32>
    %c0_16 = arith.constant 0 : index
    %c0_17 = arith.constant 0 : index
    %52 = vector.load %arg3[%c0_16, %c0_17] : memref<8x128xf32, #tpu.memory_space<vmem>>, vector<8x128xf32>
    tpu.vector_store %arg3[%c0_16, %c0_17], %51 {strides = array<i32>} : memref<8x128xf32, #tpu.memory_space<vmem>>, vector<8x128xf32>,
    %cst_18 = arith.constant dense<0.000000e+00> : vector<8x32xf32>
    %53 = tpu.matmul %51, %5, %cst_18 {dimension_numbers = #tpu.dot_dimension_numbers<[1], [1], [0], [0], [0, 0, 1, 0], [], []>} : vector<8x128xf32>, vector<32x128xf32>, vector<8x32xf32> -> vector<8x32xf32>
    %54 = vector.broadcast %9 : vector<1x32xf32> to vector<8x32xf32>
    %55 = arith.addf %53, %54 : vector<8x32xf32>
    %56 = math.tanh %55 : vector<8x32xf32>
    %cst_19 = arith.constant dense<0.000000e+00> : vector<8x40xf32>
    %57 = tpu.matmul %56, %7, %cst_19 {dimension_numbers = #tpu.dot_dimension_numbers<[1], [0], [0], [1], [0, 0, 1, 1], [], []>} : vector<8x32xf32>, vector<32x40xf32>, vector<8x40xf32> -> vector<8x40xf32>
    %58 = vector.broadcast %11 : vector<1x40xf32> to vector<8x40xf32>
    %59 = arith.addf %57, %58 : vector<8x40xf32>
    %cst_20 = arith.constant dense<0xFF800000> : vector<8xf32>
    %60 = vector.multi_reduction <maximumf>, %59, %cst_20 [1] : vector<8x40xf32> to vector<8xf32>
    %61 = vector.shape_cast %60 : vector<8xf32> to vector<8x1xf32>
    %62 = vector.broadcast %61 : vector<8x1xf32> to vector<8x40xf32>
    %63 = arith.subf %59, %62 : vector<8x40xf32>
    %64 = math.exp %63 : vector<8x40xf32>
    %65 = tpu.iota {dimensions = array<i32: 0>} : vector<40x40xi32>
    %66 = tpu.iota {dimensions = array<i32: 1>} : vector<40x40xi32>
    %c3_i32 = arith.constant 3 : i32
    %67 = vector.broadcast %c3_i32 : i32 to vector<40x40xi32>
    %68 = arith.shrsi %65, %67 : vector<40x40xi32>
    %c3_i32_21 = arith.constant 3 : i32
    %69 = vector.broadcast %c3_i32_21 : i32 to vector<40x40xi32>
    %70 = arith.shrsi %66, %69 : vector<40x40xi32>
    %71 = arith.cmpi eq, %68, %70 : vector<40x40xi32>
    %72 = arith.extui %71 : vector<40x40xi1> to vector<40x40xi32>
    %73 = arith.sitofp %72 : vector<40x40xi32> to vector<40x40xf32>
    %cst_22 = arith.constant dense<0.000000e+00> : vector<8x40xf32>
    %74 = tpu.matmul %64, %73, %cst_22 {dimension_numbers = #tpu.dot_dimension_numbers<[1], [0], [0], [1], [0, 0, 1, 1], [], []>} : vector<8x40xf32>, vector<40x40xf32>, vector<8x40xf32> -> vector<8x40xf32>
    %cst_23 = arith.constant 1.000000e-30 : f32
    %75 = vector.broadcast %cst_23 : f32 to vector<8x40xf32>
    %76 = arith.maximumf %74, %75 : vector<8x40xf32>
    %77 = math.log %76 : vector<8x40xf32>
    %78 = vector.broadcast %61 : vector<8x1xf32> to vector<8x40xf32>
    %79 = arith.addf %77, %78 : vector<8x40xf32>
    %80 = tpu.iota {dimensions = array<i32: 0>} : vector<5x40xi32>
    %81 = tpu.iota {dimensions = array<i32: 1>} : vector<5x40xi32>
    %c3_i32_24 = arith.constant 3 : i32
    %82 = vector.broadcast %c3_i32_24 : i32 to vector<5x40xi32>
    %83 = arith.shrsi %81, %82 : vector<5x40xi32>
    %84 = arith.cmpi eq, %80, %83 : vector<5x40xi32>
    %85 = arith.extui %84 : vector<5x40xi1> to vector<5x40xi32>
    %86 = arith.sitofp %85 : vector<5x40xi32> to vector<5x40xf32>
    %87 = arith.sitofp %12 : vector<8x5xi32> to vector<8x5xf32>
    %cst_25 = arith.constant dense<0.000000e+00> : vector<8x40xf32>
    %88 = tpu.matmul %87, %86, %cst_25 {dimension_numbers = #tpu.dot_dimension_numbers<[1], [0], [0], [1], [0, 0, 1, 1], [], []>} : vector<8x5xf32>, vector<5x40xf32>, vector<8x40xf32> -> vector<8x40xf32>
    %89 = tpu.iota {dimensions = array<i32: 1>} : vector<8x40xi32>
    %c7_i32 = arith.constant 7 : i32
    %90 = vector.broadcast %c7_i32 : i32 to vector<8x40xi32>
    %91 = arith.andi %89, %90 : vector<8x40xi32>
    %92 = arith.sitofp %91 : vector<8x40xi32> to vector<8x40xf32>
    %93 = arith.cmpf oeq, %92, %88 : vector<8x40xf32>
    %94 = arith.extui %93 : vector<8x40xi1> to vector<8x40xi32>
    %95 = arith.sitofp %94 : vector<8x40xi32> to vector<8x40xf32>
    %96 = arith.subf %79, %59 : vector<8x40xf32>
    %97 = arith.mulf %95, %96 : vector<8x40xf32>
    %98 = arith.mulf %95, %59 : vector<8x40xf32>
    %cst_26 = arith.constant dense<0.000000e+00> : vector<8x40xf32>
    %99 = tpu.matmul %98, %73, %cst_26 {dimension_numbers = #tpu.dot_dimension_numbers<[1], [0], [0], [1], [0, 0, 1, 1], [], []>} : vector<8x40xf32>, vector<40x40xf32>, vector<8x40xf32> -> vector<8x40xf32>
    %100 = arith.cmpf ogt, %59, %99 : vector<8x40xf32>
    %101 = arith.extui %100 : vector<8x40xi1> to vector<8x40xi32>
    %102 = arith.sitofp %101 : vector<8x40xi32> to vector<8x40xf32>
    %103 = arith.cmpf oeq, %59, %99 : vector<8x40xf32>
    %104 = arith.cmpf olt, %92, %88 : vector<8x40xf32>
    %105 = arith.andi %103, %104 : vector<8x40xi1>
    %106 = arith.extui %105 : vector<8x40xi1> to vector<8x40xi32>
    %107 = arith.sitofp %106 : vector<8x40xi32> to vector<8x40xf32>
    %cst_27 = arith.constant 1.000000e+00 : f32
    %108 = vector.broadcast %cst_27 : f32 to vector<8x40xf32>
    %109 = arith.subf %108, %95 : vector<8x40xf32>
    %110 = arith.addf %102, %107 : vector<8x40xf32>
    %111 = arith.mulf %109, %110 : vector<8x40xf32>
    %112 = tpu.iota {dimensions = array<i32: 0>} : vector<40x5xi32>
    %113 = tpu.iota {dimensions = array<i32: 1>} : vector<40x5xi32>
    %c3_i32_28 = arith.constant 3 : i32
    %114 = vector.broadcast %c3_i32_28 : i32 to vector<40x5xi32>
    %115 = arith.shrsi %112, %114 : vector<40x5xi32>
    %116 = arith.cmpi eq, %115, %113 : vector<40x5xi32>
    %117 = arith.extui %116 : vector<40x5xi1> to vector<40x5xi32>
    %118 = arith.sitofp %117 : vector<40x5xi32> to vector<40x5xf32>
    %cst_29 = arith.constant dense<0.000000e+00> : vector<8x5xf32>
    %119 = tpu.matmul %97, %118, %cst_29 {dimension_numbers = #tpu.dot_dimension_numbers<[1], [0], [0], [1], [0, 0, 1, 1], [], []>} : vector<8x40xf32>, vector<40x5xf32>, vector<8x5xf32> -> vector<8x5xf32>
    %cst_30 = arith.constant dense<0.000000e+00> : vector<8x5xf32>
    %120 = tpu.matmul %111, %118, %cst_30 {dimension_numbers = #tpu.dot_dimension_numbers<[1], [0], [0], [1], [0, 0, 1, 1], [], []>} : vector<8x40xf32>, vector<40x5xf32>, vector<8x5xf32> -> vector<8x5xf32>
    %cst_31 = arith.constant 0.000000e+00 : f32
    %121 = vector.broadcast %cst_31 : f32 to vector<8x5xf32>
    %122 = arith.cmpf oeq, %120, %121 : vector<8x5xf32>
    %123 = arith.extui %122 : vector<8x5xi1> to vector<8x5xi32>
    %124 = arith.sitofp %123 : vector<8x5xi32> to vector<8x5xf32>
    %cst_32 = arith.constant dense<0.000000e+00> : vector<5xf32>
    %125 = vector.multi_reduction <add>, %119, %cst_32 [0] : vector<8x5xf32> to vector<5xf32>
    %126 = vector.shape_cast %125 : vector<5xf32> to vector<1x5xf32>
    %cst_33 = arith.constant 1.250000e-01 : f32
    %127 = vector.broadcast %cst_33 : f32 to vector<1x5xf32>
    %128 = arith.mulf %126, %127 : vector<1x5xf32>
    %cst_34 = arith.constant dense<0.000000e+00> : vector<5xf32>
    %129 = vector.multi_reduction <add>, %124, %cst_34 [0] : vector<8x5xf32> to vector<5xf32>
    %130 = vector.shape_cast %129 : vector<5xf32> to vector<1x5xf32>
    %cst_35 = arith.constant 1.250000e-01 : f32
    %131 = vector.broadcast %cst_35 : f32 to vector<1x5xf32>
    %132 = arith.mulf %130, %131 : vector<1x5xf32>
    %cst_36 = arith.constant dense<0.000000e+00> : vector<1xf32>
    %133 = vector.multi_reduction <add>, %128, %cst_36 [1] : vector<1x5xf32> to vector<1xf32>
    %134 = vector.shape_cast %133 : vector<1xf32> to vector<1x1xf32>
    %135 = tpu.iota {dimensions = array<i32: 0>} : vector<32x128xi32>
    %136 = tpu.iota {dimensions = array<i32: 1>} : vector<32x128xi32>
    %c31_i32 = arith.constant 31 : i32
    %137 = vector.broadcast %c31_i32 : i32 to vector<32x128xi32>
    %138 = arith.andi %136, %137 : vector<32x128xi32>
    %139 = arith.cmpi eq, %135, %138 : vector<32x128xi32>
    %140 = arith.extui %139 : vector<32x128xi1> to vector<32x128xi32>
    %141 = arith.sitofp %140 : vector<32x128xi32> to vector<32x128xf32>
    %cst_37 = arith.constant dense<0.000000e+00> : vector<8x128xf32>
    %142 = tpu.matmul %56, %141, %cst_37 {dimension_numbers = #tpu.dot_dimension_numbers<[1], [0], [0], [1], [0, 0, 1, 1], [], []>} : vector<8x32xf32>, vector<32x128xf32>, vector<8x128xf32> -> vector<8x128xf32>
    %143 = tpu.iota {dimensions = array<i32: 0>} : vector<128x4xi32>
    %144 = tpu.iota {dimensions = array<i32: 1>} : vector<128x4xi32>
    %c5_i32 = arith.constant 5 : i32
    %145 = vector.broadcast %c5_i32 : i32 to vector<128x4xi32>
    %146 = arith.shrsi %143, %145 : vector<128x4xi32>
    %147 = arith.cmpi eq, %146, %144 : vector<128x4xi32>
    %148 = arith.extui %147 : vector<128x4xi1> to vector<128x4xi32>
    %149 = arith.sitofp %148 : vector<128x4xi32> to vector<128x4xf32>
    %150 = arith.mulf %0, %142 : vector<8x128xf32>
    %cst_38 = arith.constant dense<0.000000e+00> : vector<8x4xf32>
    %151 = tpu.matmul %150, %149, %cst_38 {dimension_numbers = #tpu.dot_dimension_numbers<[1], [0], [0], [1], [0, 0, 1, 1], [], []>} : vector<8x128xf32>, vector<128x4xf32>, vector<8x4xf32> -> vector<8x4xf32>
    %152 = vector.extract_strided_slice %151 {offsets = [0, 0], sizes = [8, 1], strides = [1, 1]} : vector<8x4xf32> to vector<8x1xf32>
    %153 = vector.extract_strided_slice %151 {offsets = [0, 1], sizes = [8, 3], strides = [1, 1]} : vector<8x4xf32> to vector<8x3xf32>
    %cst_39 = arith.constant 1.000000e+00 : f32
    %154 = vector.broadcast %cst_39 : f32 to vector<8x1xf32>
    %155 = arith.subf %154, %152 : vector<8x1xf32>
    %156 = vector.broadcast %155 : vector<8x1xf32> to vector<8x3xf32>
    %157 = arith.addf %156, %153 : vector<8x3xf32>
    %cst_40 = arith.constant 0.000000e+00 : f32
    %158 = vector.broadcast %cst_40 : f32 to vector<8x3xf32>
    %159 = arith.maximumf %158, %157 : vector<8x3xf32>
    %cst_41 = arith.constant dense<0.000000e+00> : vector<8xf32>
    %160 = vector.multi_reduction <add>, %159, %cst_41 [1] : vector<8x3xf32> to vector<8xf32>
    %161 = vector.shape_cast %160 : vector<8xf32> to vector<8x1xf32>
    %cst_42 = arith.constant dense<0xFF800000> : vector<8xf32>
    %162 = vector.multi_reduction <maximumf>, %153, %cst_42 [1] : vector<8x3xf32> to vector<8xf32>
    %163 = vector.shape_cast %162 : vector<8xf32> to vector<8x1xf32>
    %164 = arith.cmpf oge, %152, %163 : vector<8x1xf32>
    %165 = arith.extui %164 : vector<8x1xi1> to vector<8x1xi32>
    %166 = arith.sitofp %165 : vector<8x1xi32> to vector<8x1xf32>
    %cst_43 = arith.constant dense<0.000000e+00> : vector<1xf32>
    %167 = vector.multi_reduction <add>, %161, %cst_43 [0] : vector<8x1xf32> to vector<1xf32>
    %168 = vector.shape_cast %167 : vector<1xf32> to vector<1x1xf32>
    %cst_44 = arith.constant 1.250000e-01 : f32
    %169 = vector.broadcast %cst_44 : f32 to vector<1x1xf32>
    %170 = arith.mulf %168, %169 : vector<1x1xf32>
    %cst_45 = arith.constant dense<0.000000e+00> : vector<1xf32>
    %171 = vector.multi_reduction <add>, %166, %cst_45 [0] : vector<8x1xf32> to vector<1xf32>
    %172 = vector.shape_cast %171 : vector<1xf32> to vector<1x1xf32>
    %cst_46 = arith.constant 1.250000e-01 : f32
    %173 = vector.broadcast %cst_46 : f32 to vector<1x1xf32>
    %174 = arith.mulf %172, %173 : vector<1x1xf32>
    %cst_47 = arith.constant 5.000000e-01 : f32
    %175 = vector.broadcast %cst_47 : f32 to vector<1x1xf32>
    %176 = arith.mulf %175, %134 : vector<1x1xf32>
    %cst_48 = arith.constant 5.000000e-01 : f32
    %177 = vector.broadcast %cst_48 : f32 to vector<1x1xf32>
    %178 = arith.mulf %177, %170 : vector<1x1xf32>
    %179 = arith.addf %176, %178 : vector<1x1xf32>
    %180 = tpu.iota {dimensions = array<i32: 0>} : vector<5x16xi32>
    %181 = tpu.iota {dimensions = array<i32: 1>} : vector<5x16xi32>
    %182 = arith.cmpi eq, %181, %180 : vector<5x16xi32>
    %183 = arith.extui %182 : vector<5x16xi1> to vector<5x16xi32>
    %184 = arith.sitofp %183 : vector<5x16xi32> to vector<5x16xf32>
    %c5_i32_49 = arith.constant 5 : i32
    %185 = vector.broadcast %c5_i32_49 : i32 to vector<5x16xi32>
    %186 = arith.addi %180, %185 : vector<5x16xi32>
    %187 = arith.cmpi eq, %181, %186 : vector<5x16xi32>
    %188 = arith.extui %187 : vector<5x16xi1> to vector<5x16xi32>
    %189 = arith.sitofp %188 : vector<5x16xi32> to vector<5x16xf32>
    %190 = tpu.iota {dimensions = array<i32: 1>} : vector<1x16xi32>
    %cst_50 = arith.constant dense<0.000000e+00> : vector<1x16xf32>
    %191 = tpu.matmul %128, %184, %cst_50 {dimension_numbers = #tpu.dot_dimension_numbers<[1], [0], [0], [1], [0, 0, 1, 1], [], []>} : vector<1x5xf32>, vector<5x16xf32>, vector<1x16xf32> -> vector<1x16xf32>
    %cst_51 = arith.constant dense<0.000000e+00> : vector<1x16xf32>
    %192 = tpu.matmul %132, %189, %cst_51 {dimension_numbers = #tpu.dot_dimension_numbers<[1], [0], [0], [1], [0, 0, 1, 1], [], []>} : vector<1x5xf32>, vector<5x16xf32>, vector<1x16xf32> -> vector<1x16xf32>
    %193 = arith.addf %191, %192 : vector<1x16xf32>
    %c10_i32 = arith.constant 10 : i32
    %194 = vector.broadcast %c10_i32 : i32 to vector<1x16xi32>
    %195 = arith.cmpi eq, %190, %194 : vector<1x16xi32>
    %196 = arith.extui %195 : vector<1x16xi1> to vector<1x16xi32>
    %197 = arith.sitofp %196 : vector<1x16xi32> to vector<1x16xf32>
    %198 = vector.broadcast %179 : vector<1x1xf32> to vector<1x16xf32>
    %199 = arith.mulf %198, %197 : vector<1x16xf32>
    %200 = arith.addf %193, %199 : vector<1x16xf32>
    %c11_i32 = arith.constant 11 : i32
    %201 = vector.broadcast %c11_i32 : i32 to vector<1x16xi32>
    %202 = arith.cmpi eq, %190, %201 : vector<1x16xi32>
    %203 = arith.extui %202 : vector<1x16xi1> to vector<1x16xi32>
    %204 = arith.sitofp %203 : vector<1x16xi32> to vector<1x16xf32>
    %205 = vector.broadcast %134 : vector<1x1xf32> to vector<1x16xf32>
    %206 = arith.mulf %205, %204 : vector<1x16xf32>
    %207 = arith.addf %200, %206 : vector<1x16xf32>
    %c12_i32 = arith.constant 12 : i32
    %208 = vector.broadcast %c12_i32 : i32 to vector<1x16xi32>
    %209 = arith.cmpi eq, %190, %208 : vector<1x16xi32>
    %210 = arith.extui %209 : vector<1x16xi1> to vector<1x16xi32>
    %211 = arith.sitofp %210 : vector<1x16xi32> to vector<1x16xf32>
    %212 = vector.broadcast %170 : vector<1x1xf32> to vector<1x16xf32>
    %213 = arith.mulf %212, %211 : vector<1x16xf32>
    %214 = arith.addf %207, %213 : vector<1x16xf32>
    %c13_i32 = arith.constant 13 : i32
    %215 = vector.broadcast %c13_i32 : i32 to vector<1x16xi32>
    %216 = arith.cmpi eq, %190, %215 : vector<1x16xi32>
    %217 = arith.extui %216 : vector<1x16xi1> to vector<1x16xi32>
    %218 = arith.sitofp %217 : vector<1x16xi32> to vector<1x16xf32>
    %219 = vector.broadcast %174 : vector<1x1xf32> to vector<1x16xf32>
    %220 = arith.mulf %219, %218 : vector<1x16xf32>
    %221 = arith.addf %214, %220 : vector<1x16xf32>
    %c0_52 = arith.constant 0 : index
    %c0_53 = arith.constant 0 : index
    %222 = vector.load %arg4[%c0_52, %c0_53] : memref<1x16xf32, #tpu.memory_space<vmem>>, vector<1x16xf32>
    tpu.vector_store %arg4[%c0_52, %c0_53], %221 {strides = array<i32>} : memref<1x16xf32, #tpu.memory_space<vmem>>, vector<1x16xf32>,
    return
  }
}

</mosaic_0001>

<llo_original>
// kernel: shapes_trainer_forward.1
$region0: #{shapes_trainer_forward.1}
  #allocation0 [shape = 'u32[]', space=smem, size = 0x4, offset = 0x4, fixed_abs, tag = 'smem constant byte address 0x4 - core index']
  #allocation1 [shape = 'u32[144,128]{1,0:T(1,128)}', space=vmem, size = 0x12000, scoped, tag = 'internal scratch']
  %s0 = inlined_call_operand.vmem [shape: f32[8,128], index: 0, kind: input, shape index: {}]
  %s1 = inlined_call_operand.vmem [shape: s32[8,8], index: 1, kind: input, shape index: {}]
  %s2 = inlined_call_operand.vmem [shape: bf16[104,128], index: 2, kind: input, shape index: {}]
  %s3 = inlined_call_operand.vmem [shape: f32[8,128], index: 3, kind: output, shape index: {0}]
  %s4 = inlined_call_operand.vmem [shape: f32[1,16], index: 4, kind: output, shape index: {1}]
  %5 = xla_tuple %s3, %s4
  %s6 = sld [smem:[#allocation0]]
  $region30: #{shapes_trainer_forward.1} parent=0
    _
  %s8 = ssub.s32 1, %s6
  %s9 = scalar_select 0, %s8, %s6
  // Predicated region
  $region2: #{shapes_trainer_forward.1} parent=0 // pred_check
    _
  $region3: #{shapes_trainer_forward.1} parent=0 // pred_check_branch
    %11 = sbr.rel (0) target = $region5
  $region4: #{shapes_trainer_forward.1} parent=0 // pred_region
    _
  $region5: #{shapes_trainer_forward.1} parent=0 // pred_fallthru
    _
  // Predicated region
  $region6: #{shapes_trainer_forward.1} parent=0 // pred_check
    _
  $region7: #{shapes_trainer_forward.1} parent=0 // pred_check_branch
    %13 = sbr.rel (0) target = $region9
  $region8: #{shapes_trainer_forward.1} parent=0 // pred_region
    _
  $region9: #{shapes_trainer_forward.1} parent=0 // pred_fallthru
    _
  // Predicated region
  $region10: #{shapes_trainer_forward.1} parent=0 // pred_check
    _
  $region11: #{shapes_trainer_forward.1} parent=0 // pred_check_branch
    %15 = sbr.rel (0) target = $region13
  $region12: #{shapes_trainer_forward.1} parent=0 // pred_region
    _
  $region13: #{shapes_trainer_forward.1} parent=0 // pred_fallthru
    _
  %v16 = vld [vmem:[%s0] sm:$0xff]
  %v17 = vld [vmem:[%s2] sm:$0xf]
  %v18 = vld [vmem:[%s2 + $0x4] sm:$0xf]
  %v19 = vld [vmem:[%s2 + $0x8] sm:$0xf]
  %v20 = vld [vmem:[%s2 + $0xc] sm:$0xf]
  %v21 = vunpack.c.l.bf16 %v17
  %v22 = vunpack.c.l.bf16 %v18
  %v23 = vunpack.c.l.bf16 %v19
  %v24 = vunpack.c.l.bf16 %v20
  %v25 = vld [vmem:[%s2 + $0x10] sm:$0xf]
  %v26 = vld [vmem:[%s2 + $0x14] sm:$0xf]
  %v27 = vld [vmem:[%s2 + $0x18] sm:$0xf]
  %v28 = vld [vmem:[%s2 + $0x1c] sm:$0xf]
  %v29 = vunpack.c.l.bf16 %v25
  %v30 = vunpack.c.l.bf16 %v26
  %v31 = vunpack.c.l.bf16 %v27
  %v32 = vunpack.c.l.bf16 %v28
  %v33 = vld [vmem:[%s2 + $0x20] sm:$0xf]
  %v34 = vld [vmem:[%s2 + $0x24] sm:$0xf]
  %v35 = vld [vmem:[%s2 + $0x28] sm:$0xf]
  %v36 = vld [vmem:[%s2 + $0x2c] sm:$0xf]
  %v37 = vunpack.c.l.bf16 %v33
  %v38 = vunpack.c.l.bf16 %v34
  %v39 = vunpack.c.l.bf16 %v35
  %v40 = vunpack.c.l.bf16 %v36
  %v41 = vld [vmem:[%s2 + $0x30] sm:$0x1]
  %v42 = vunpack.c.l.bf16 %v41
  %v43 = vld [vmem:[%s1] sm:$0xff]
  %vm44 = vcmask 261120
  %v46 = vsel %vm44, %v16, 0
  %48 = vmatprep.subr.mxu0 0.0
  %49 = vmatpush1.msra.mxu0 0.0
  %50 = vmatprep.subr.mxu0 0.0
  %51 = vmatpush1.msra.mxu0 0.0
  %52 = vmatprep.subr.mxu0 0.0
  %53 = vmatpush1.msra.mxu0 0.0
  %54 = vmatprep.subr.mxu0 0.0
  %55 = vmatpush1.msra.mxu0 0.0
  %56 = vmatprep.subr.mxu0 0.0
  %57 = vmatpush1.msra.mxu0 0.0
  %58 = vmatprep.subr.mxu0 0.0
  %59 = vmatpush1.msra.mxu0 0.0
  %60 = vmatprep.subr.mxu0 0.0
  %61 = vmatpush1.msra.mxu0 0.0
  %62 = vmatprep.subr.mxu0 0.0
  %63 = vmatpush1.msra.mxu0 0.0
  %64 = vmatprep.subr.mxu0 0.0
  %65 = vmatpush1.msra.mxu0 0.0
  %66 = vmatprep.subr.mxu0 0.0
  %67 = vmatpush1.msra.mxu0 0.0
  %68 = vmatprep.subr.mxu0 0.0
  %69 = vmatpush1.msra.mxu0 0.0
  %70 = vmatprep.subr.mxu0 0.0
  %71 = vmatpush1.msra.mxu0 0.0
  %72 = vmatprep.subr.mxu0 0.0
  %73 = vmatpush1.msra.mxu0 %v24
  %74 = vmatprep.subr.mxu0 0.0
  %75 = vmatpush1.msra.mxu0 %v23
  %76 = vmatprep.subr.mxu0 0.0
  %77 = vmatpush1.msra.mxu0 %v22
  %78 = vmatprep.subr.mxu0 0.0
  %79 = vmatpush1.msra.mxu0 %v21
  %80 = vmatprep.subr.mxu0 0.0
  %81 = vmatpush2.msra.mxu0 0.0
  %82 = vmatprep.subr.mxu0 0.0
  %83 = vmatpush2.msra.mxu0 0.0
  %84 = vmatprep.subr.mxu0 0.0
  %85 = vmatpush2.msra.mxu0 0.0
  %86 = vmatprep.subr.mxu0 0.0
  %87 = vmatpush2.msra.mxu0 0.0
  %88 = vmatprep.subr.mxu0 0.0
  %89 = vmatpush2.msra.mxu0 0.0
  %90 = vmatprep.subr.mxu0 0.0
  %91 = vmatpush2.msra.mxu0 0.0
  %92 = vmatprep.subr.mxu0 0.0
  %93 = vmatpush2.msra.mxu0 0.0
  %94 = vmatprep.subr.mxu0 0.0
  %95 = vmatpush2.msra.mxu0 0.0
  %96 = vmatprep.subr.mxu0 0.0
  %97 = vmatpush2.msra.mxu0 0.0
  %98 = vmatprep.subr.mxu0 0.0
  %99 = vmatpush2.msra.mxu0 0.0
  %100 = vmatprep.subr.mxu0 0.0
  %101 = vmatpush2.msra.mxu0 0.0
  %102 = vmatprep.subr.mxu0 0.0
  %103 = vmatpush2.msra.mxu0 0.0
  %104 = vmatprep.subr.mxu0 0.0
  %105 = vmatpush2.msra.mxu0 0.0
  %106 = vmatprep.subr.mxu0 0.0
  %107 = vmatpush2.msra.mxu0 0.0
  %108 = vmatprep.subr.mxu0 0.0
  %109 = vmatpush2.msra.mxu0 0.0
  %110 = vmatprep.subr.mxu0 0.0
  %111 = vmatpush2.msra.mxu0 0.0
  %112 = vmatprep.mubr.f32.mxu0 0.0
  %113 = vmatmul.mubr.f32.gmra.mxu0 %v46
  %v114 = vpop.f32.mrf.mxu0
  %v115 = vadd.f32 0.0, %v114
  %v116 = vpop.f32.mrf.mxu0
  %117 = vdwg.mxu0
  %118 = vmax.xlane.f32.xlu0 %v115
  %v119 = vpop.xlane.xlu0 %118
  %v120 = vsub.f32 %v115, %v119
  %v121 = vmul.f32 %v120, 1.442695
  %v122 = vpow.pop %v121
  %v123 = vlaneseq
  %v124 = vshrl.u32 %v123, 7
  %v125 = vadd.s32 %v124, 8
  %v126 = vadd.s32 %v124, 16
  %v127 = vadd.s32 %v124, 24
  %v128 = vadd.s32 %v124, 32
  %v129 = vadd.s32 %v124, 40
  %v130 = vadd.s32 %v124, 48
  %v131 = vadd.s32 %v124, 56
  %v132 = vadd.s32 %v124, 64
  %v133 = vadd.s32 %v124, 72
  %v134 = vadd.s32 %v124, 80
  %v135 = vadd.s32 %v124, 88
  %v136 = vadd.s32 %v124, 96
  %v137 = vadd.s32 %v124, 104
  %v138 = vadd.s32 %v124, 112
  %v139 = vadd.s32 %v124, 120
  %v140 = vlaneseq
  %v141 = vand.u32 %v140, 127
  %v142 = vshra.s32 %v124, 4
  %v143 = vshra.s32 %v125, 4
  %v144 = vshra.s32 %v126, 4
  %v145 = vshra.s32 %v127, 4
  %v146 = vshra.s32 %v128, 4
  %v147 = vshra.s32 %v129, 4
  %v148 = vshra.s32 %v130, 4
  %v149 = vshra.s32 %v131, 4
  %v150 = vshra.s32 %v132, 4
  %v151 = vshra.s32 %v133, 4
  %v152 = vshra.s32 %v134, 4
  %v153 = vshra.s32 %v135, 4
  %v154 = vshra.s32 %v136, 4
  %v155 = vshra.s32 %v137, 4
  %v156 = vshra.s32 %v138, 4
  %v157 = vshra.s32 %v139, 4
  %v158 = vshra.s32 %v141, 4
  %vm159 = vcmp.eq.s32.totalorder %v142, %v158
  %vm160 = vcmp.eq.s32.totalorder %v143, %v158
  %vm161 = vcmp.eq.s32.totalorder %v144, %v158
  %vm162 = vcmp.eq.s32.totalorder %v145, %v158
  %vm163 = vcmp.eq.s32.totalorder %v146, %v158
  %vm164 = vcmp.eq.s32.totalorder %v147, %v158
  %vm165 = vcmp.eq.s32.totalorder %v148, %v158
  %vm166 = vcmp.eq.s32.totalorder %v149, %v158
  %vm167 = vcmp.eq.s32.totalorder %v150, %v158
  %vm168 = vcmp.eq.s32.totalorder %v151, %v158
  %vm169 = vcmp.eq.s32.totalorder %v152, %v158
  %vm170 = vcmp.eq.s32.totalorder %v153, %v158
  %vm171 = vcmp.eq.s32.totalorder %v154, %v158
  %vm172 = vcmp.eq.s32.totalorder %v155, %v158
  %vm173 = vcmp.eq.s32.totalorder %v156, %v158
  %vm174 = vcmp.eq.s32.totalorder %v157, %v158
  %v175 = vsel %vm159, 1, 0
  %v176 = vsel %vm160, 1, 0
  %v177 = vsel %vm161, 1, 0
  %v178 = vsel %vm162, 1, 0
  %v179 = vsel %vm163, 1, 0
  %v180 = vsel %vm164, 1, 0
  %v181 = vsel %vm165, 1, 0
  %v182 = vsel %vm166, 1, 0
  %v183 = vsel %vm167, 1, 0
  %v184 = vsel %vm168, 1, 0
  %v185 = vsel %vm169, 1, 0
  %v186 = vsel %vm170, 1, 0
  %v187 = vsel %vm171, 1, 0
  %v188 = vsel %vm172, 1, 0
  %v189 = vsel %vm173, 1, 0
  %v190 = vsel %vm174, 1, 0
  %v191 = vcvt.s32.f32 %v175
  %v192 = vcvt.s32.f32 %v176
  %v193 = vcvt.s32.f32 %v177
  %v194 = vcvt.s32.f32 %v178
  %v195 = vcvt.s32.f32 %v179
  %v196 = vcvt.s32.f32 %v180
  %v197 = vcvt.s32.f32 %v181
  %v198 = vcvt.s32.f32 %v182
  %v199 = vcvt.s32.f32 %v183
  %v200 = vcvt.s32.f32 %v184
  %v201 = vcvt.s32.f32 %v185
  %v202 = vcvt.s32.f32 %v186
  %v203 = vcvt.s32.f32 %v187
  %v204 = vcvt.s32.f32 %v188
  %v205 = vcvt.s32.f32 %v189
  %v206 = vcvt.s32.f32 %v190
  %207 = vmatprep.subr.mxu0 0.0
  %208 = vmatpush1.msra.mxu0 %v206
  %209 = vmatprep.subr.mxu0 0.0
  %210 = vmatpush1.msra.mxu0 %v205
  %211 = vmatprep.subr.mxu0 0.0
  %212 = vmatpush1.msra.mxu0 %v204
  %213 = vmatprep.subr.mxu0 0.0
  %214 = vmatpush1.msra.mxu0 %v203
  %215 = vmatprep.subr.mxu0 0.0
  %216 = vmatpush1.msra.mxu0 %v202
  %217 = vmatprep.subr.mxu0 0.0
  %218 = vmatpush1.msra.mxu0 %v201
  %219 = vmatprep.subr.mxu0 0.0
  %220 = vmatpush1.msra.mxu0 %v200
  %221 = vmatprep.subr.mxu0 0.0
  %222 = vmatpush1.msra.mxu0 %v199
  %223 = vmatprep.subr.mxu0 0.0
  %224 = vmatpush1.msra.mxu0 %v198
  %225 = vmatprep.subr.mxu0 0.0
  %226 = vmatpush1.msra.mxu0 %v197
  %227 = vmatprep.subr.mxu0 0.0
  %228 = vmatpush1.msra.mxu0 %v196
  %229 = vmatprep.subr.mxu0 0.0
  %230 = vmatpush1.msra.mxu0 %v195
  %231 = vmatprep.subr.mxu0 0.0
  %232 = vmatpush1.msra.mxu0 %v194
  %233 = vmatprep.subr.mxu0 0.0
  %234 = vmatpush1.msra.mxu0 %v193
  %235 = vmatprep.subr.mxu0 0.0
  %236 = vmatpush1.msra.mxu0 %v192
  %237 = vmatprep.subr.mxu0 0.0
  %238 = vmatpush1.msra.mxu0 %v191
  %239 = vmatprep.subr.mxu0 0.0
  %240 = vmatpush2.msra.mxu0 0.0
  %241 = vmatprep.subr.mxu0 0.0
  %242 = vmatpush2.msra.mxu0 0.0
  %243 = vmatprep.subr.mxu0 0.0
  %244 = vmatpush2.msra.mxu0 0.0
  %245 = vmatprep.subr.mxu0 0.0
  %246 = vmatpush2.msra.mxu0 0.0
  %247 = vmatprep.subr.mxu0 0.0
  %248 = vmatpush2.msra.mxu0 0.0
  %249 = vmatprep.subr.mxu0 0.0
  %250 = vmatpush2.msra.mxu0 0.0
  %251 = vmatprep.subr.mxu0 0.0
  %252 = vmatpush2.msra.mxu0 0.0
  %253 = vmatprep.subr.mxu0 0.0
  %254 = vmatpush2.msra.mxu0 0.0
  %255 = vmatprep.subr.mxu0 0.0
  %256 = vmatpush2.msra.mxu0 0.0
  %257 = vmatprep.subr.mxu0 0.0
  %258 = vmatpush2.msra.mxu0 0.0
  %259 = vmatprep.subr.mxu0 0.0
  %260 = vmatpush2.msra.mxu0 0.0
  %261 = vmatprep.subr.mxu0 0.0
  %262 = vmatpush2.msra.mxu0 0.0
  %263 = vmatprep.subr.mxu0 0.0
  %264 = vmatpush2.msra.mxu0 0.0
  %265 = vmatprep.subr.mxu0 0.0
  %266 = vmatpush2.msra.mxu0 0.0
  %267 = vmatprep.subr.mxu0 0.0
  %268 = vmatpush2.msra.mxu0 0.0
  %269 = vmatprep.subr.mxu0 0.0
  %270 = vmatpush2.msra.mxu0 0.0
  %271 = vmatprep.mubr.f32.mxu0 0.0
  %272 = vmatmul.mubr.f32.gmra.mxu0 %v122
  %v273 = vpop.f32.mrf.mxu0
  %v274 = vadd.f32 0.0, %v273
  %v275 = vpop.f32.mrf.mxu0
  %276 = vdwg.mxu0
  %v277 = vmax.f32 %v274, 1e-30
  %v278 = vrcp.pop %v277
  %v279 = vmul.f32 %v122, %v278
  %v280 = vand.u32 %v141, 15
  %v281 = vmul.u32 %v43, 16
  %282 = vset.pattern.permute.xlu0 5
  %283 = vperm.xlu0 %282, %v281
  %v284 = vpop.permute.xlu0 %283
  %vm285 = vcmp.lt.s32.totalorder %v141, %v284
  %v286 = vsel %vm285, 1, 0
  %v287 = vcvt.s32.f32 %v286
  %vm288 = vcmp.eq.s32.totalorder %v280, 0
  %v289 = vsel %vm288, 1, 0
  %v290 = vcvt.s32.f32 %v289
  %v291 = vmul.f32 %v279, %v287
  %v292 = vsub.f32 1.0, %v287
  %v293 = vmul.f32 %v290, %v292
  %v294 = vadd.f32 %v291, %v293
  %295 = vst [vmem:[%s3] sm:$0xff] %v294
  %v296 = vlaneseq
  %v297 = vshrl.u32 %v296, 7
  %v298 = vsub.s32 0, %v297
  %v299 = vrot.slane %v42, %v298
  %300 = vmatprep.subr.mxu0 0.0
  %301 = vmatpush1.xpose.msra.mxu0 0.0
  %302 = vmatprep.subr.mxu0 0.0
  %303 = vmatpush1.xpose.msra.mxu0 0.0
  %304 = vmatprep.subr.mxu0 0.0
  %305 = vmatpush1.xpose.msra.mxu0 0.0
  %306 = vmatprep.subr.mxu0 0.0
  %307 = vmatpush1.xpose.msra.mxu0 0.0
  %308 = vmatprep.subr.mxu0 0.0
  %309 = vmatpush1.xpose.msra.mxu0 0.0
  %310 = vmatprep.subr.mxu0 0.0
  %311 = vmatpush1.xpose.msra.mxu0 0.0
  %312 = vmatprep.subr.mxu0 0.0
  %313 = vmatpush1.xpose.msra.mxu0 0.0
  %314 = vmatprep.subr.mxu0 0.0
  %315 = vmatpush1.xpose.msra.mxu0 0.0
  %316 = vmatprep.subr.mxu0 0.0
  %317 = vmatpush1.xpose.msra.mxu0 0.0
  %318 = vmatprep.subr.mxu0 0.0
  %319 = vmatpush1.xpose.msra.mxu0 0.0
  %320 = vmatprep.subr.mxu0 0.0
  %321 = vmatpush1.xpose.msra.mxu0 0.0
  %322 = vmatprep.subr.mxu0 0.0
  %323 = vmatpush1.xpose.msra.mxu0 0.0
  %324 = vmatprep.subr.mxu0 0.0
  %325 = vmatpush1.xpose.msra.mxu0 %v32
  %326 = vmatprep.subr.mxu0 0.0
  %327 = vmatpush1.xpose.msra.mxu0 %v31
  %328 = vmatprep.subr.mxu0 0.0
  %329 = vmatpush1.xpose.msra.mxu0 %v30
  %330 = vmatprep.subr.mxu0 0.0
  %331 = vmatpush1.xpose.msra.mxu0 %v29
  %332 = vmatprep.subr.mxu0 0.0
  %333 = vmatpush2.xpose.msra.mxu0 0.0
  %334 = vmatprep.subr.mxu0 0.0
  %335 = vmatpush2.xpose.msra.mxu0 0.0
  %336 = vmatprep.subr.mxu0 0.0
  %337 = vmatpush2.xpose.msra.mxu0 0.0
  %338 = vmatprep.subr.mxu0 0.0
  %339 = vmatpush2.xpose.msra.mxu0 0.0
  %340 = vmatprep.subr.mxu0 0.0
  %341 = vmatpush2.xpose.msra.mxu0 0.0
  %342 = vmatprep.subr.mxu0 0.0
  %343 = vmatpush2.xpose.msra.mxu0 0.0
  %344 = vmatprep.subr.mxu0 0.0
  %345 = vmatpush2.xpose.msra.mxu0 0.0
  %346 = vmatprep.subr.mxu0 0.0
  %347 = vmatpush2.xpose.msra.mxu0 0.0
  %348 = vmatprep.subr.mxu0 0.0
  %349 = vmatpush2.xpose.msra.mxu0 0.0
  %350 = vmatprep.subr.mxu0 0.0
  %351 = vmatpush2.xpose.msra.mxu0 0.0
  %352 = vmatprep.subr.mxu0 0.0
  %353 = vmatpush2.xpose.msra.mxu0 0.0
  %354 = vmatprep.subr.mxu0 0.0
  %355 = vmatpush2.xpose.msra.mxu0 0.0
  %356 = vmatprep.subr.mxu0 0.0
  %357 = vmatpush2.xpose.msra.mxu0 0.0
  %358 = vmatprep.subr.mxu0 0.0
  %359 = vmatpush2.xpose.msra.mxu0 0.0
  %360 = vmatprep.subr.mxu0 0.0
  %361 = vmatpush2.xpose.msra.mxu0 0.0
  %362 = vmatprep.subr.mxu0 0.0
  %363 = vmatpush2.xpose.msra.mxu0 0.0
  %364 = vmatprep.mubr.f32.mxu0 0.0
  %365 = vmatmul.mubr.f32.gmra.mxu0 %v294
  %v366 = vpop.f32.mrf.mxu0
  %v367 = vadd.f32 %v299, %v366
  %v368 = vpop.f32.mrf.mxu0
  %369 = vdwg.mxu0
  %v370 = vtanh.pop %v367
  %372 = vrot.lane.b32.xlu0 %v299, 64
  %v373 = vpop.permute.xlu0 %372
  %v376 = vsel %vm44, %v370, 0
  %378 = vmatprep.subr.mxu0 0.0
  %379 = vmatpush1.msra.mxu0 0.0
  %380 = vmatprep.subr.mxu0 0.0
  %381 = vmatpush1.msra.mxu0 0.0
  %382 = vmatprep.subr.mxu0 0.0
  %383 = vmatpush1.msra.mxu0 0.0
  %384 = vmatprep.subr.mxu0 0.0
  %385 = vmatpush1.msra.mxu0 0.0
  %386 = vmatprep.subr.mxu0 0.0
  %387 = vmatpush1.msra.mxu0 0.0
  %388 = vmatprep.subr.mxu0 0.0
  %389 = vmatpush1.msra.mxu0 0.0
  %390 = vmatprep.subr.mxu0 0.0
  %391 = vmatpush1.msra.mxu0 0.0
  %392 = vmatprep.subr.mxu0 0.0
  %393 = vmatpush1.msra.mxu0 0.0
  %394 = vmatprep.subr.mxu0 0.0
  %395 = vmatpush1.msra.mxu0 0.0
  %396 = vmatprep.subr.mxu0 0.0
  %397 = vmatpush1.msra.mxu0 0.0
  %398 = vmatprep.subr.mxu0 0.0
  %399 = vmatpush1.msra.mxu0 0.0
  %400 = vmatprep.subr.mxu0 0.0
  %401 = vmatpush1.msra.mxu0 0.0
  %402 = vmatprep.subr.mxu0 0.0
  %403 = vmatpush1.msra.mxu0 %v40
  %404 = vmatprep.subr.mxu0 0.0
  %405 = vmatpush1.msra.mxu0 %v39
  %406 = vmatprep.subr.mxu0 0.0
  %407 = vmatpush1.msra.mxu0 %v38
  %408 = vmatprep.subr.mxu0 0.0
  %409 = vmatpush1.msra.mxu0 %v37
  %410 = vmatprep.subr.mxu0 0.0
  %411 = vmatpush2.msra.mxu0 0.0
  %412 = vmatprep.subr.mxu0 0.0
  %413 = vmatpush2.msra.mxu0 0.0
  %414 = vmatprep.subr.mxu0 0.0
  %415 = vmatpush2.msra.mxu0 0.0
  %416 = vmatprep.subr.mxu0 0.0
  %417 = vmatpush2.msra.mxu0 0.0
  %418 = vmatprep.subr.mxu0 0.0
  %419 = vmatpush2.msra.mxu0 0.0
  %420 = vmatprep.subr.mxu0 0.0
  %421 = vmatpush2.msra.mxu0 0.0
  %422 = vmatprep.subr.mxu0 0.0
  %423 = vmatpush2.msra.mxu0 0.0
  %424 = vmatprep.subr.mxu0 0.0
  %425 = vmatpush2.msra.mxu0 0.0
  %426 = vmatprep.subr.mxu0 0.0
  %427 = vmatpush2.msra.mxu0 0.0
  %428 = vmatprep.subr.mxu0 0.0
  %429 = vmatpush2.msra.mxu0 0.0
  %430 = vmatprep.subr.mxu0 0.0
  %431 = vmatpush2.msra.mxu0 0.0
  %432 = vmatprep.subr.mxu0 0.0
  %433 = vmatpush2.msra.mxu0 0.0
  %434 = vmatprep.subr.mxu0 0.0
  %435 = vmatpush2.msra.mxu0 0.0
  %436 = vmatprep.subr.mxu0 0.0
  %437 = vmatpush2.msra.mxu0 0.0
  %438 = vmatprep.subr.mxu0 0.0
  %439 = vmatpush2.msra.mxu0 0.0
  %440 = vmatprep.subr.mxu0 0.0
  %441 = vmatpush2.msra.mxu0 0.0
  %442 = vmatprep.mubr.f32.mxu0 0.0
  %443 = vmatmul.mubr.f32.gmra.mxu0 %v376
  %v444 = vpop.f32.mrf.mxu0
  %v445 = vadd.f32 %v373, %v444
  %v446 = vpop.f32.mrf.mxu0
  %447 = vdwg.mxu0
  %vm448 = vcmask 326656
  %v449 = vsel %vm448, %v445, -inf
  %450 = vmax.xlane.f32.xlu0 %v449
  %v451 = vpop.xlane.xlu0 %450
  %v452 = vsub.f32 %v445, %v451
  %v453 = vmul.f32 %v452, 1.442695
  %v454 = vpow.pop %v453
  %v455 = vshra.s32 %v124, 3
  %v456 = vshra.s32 %v125, 3
  %v457 = vshra.s32 %v126, 3
  %v458 = vshra.s32 %v127, 3
  %v459 = vshra.s32 %v128, 3
  %v460 = vshra.s32 %v141, 3
  %vm461 = vcmp.eq.s32.totalorder %v455, %v460
  %vm462 = vcmp.eq.s32.totalorder %v456, %v460
  %vm463 = vcmp.eq.s32.totalorder %v457, %v460
  %vm464 = vcmp.eq.s32.totalorder %v458, %v460
  %vm465 = vcmp.eq.s32.totalorder %v459, %v460
  %v466 = vsel %vm461, 1, 0
  %v467 = vsel %vm462, 1, 0
  %v468 = vsel %vm463, 1, 0
  %v469 = vsel %vm464, 1, 0
  %v470 = vsel %vm465, 1, 0
  %v471 = vcvt.s32.f32 %v466
  %v472 = vcvt.s32.f32 %v467
  %v473 = vcvt.s32.f32 %v468
  %v474 = vcvt.s32.f32 %v469
  %v475 = vcvt.s32.f32 %v470
  %v477 = vsel %vm448, %v454, 0
  %479 = vmatprep.subr.mxu0 0.0
  %480 = vmatpush1.msra.mxu0 0.0
  %481 = vmatprep.subr.mxu0 0.0
  %482 = vmatpush1.msra.mxu0 0.0
  %483 = vmatprep.subr.mxu0 0.0
  %484 = vmatpush1.msra.mxu0 0.0
  %485 = vmatprep.subr.mxu0 0.0
  %486 = vmatpush1.msra.mxu0 0.0
  %487 = vmatprep.subr.mxu0 0.0
  %488 = vmatpush1.msra.mxu0 0.0
  %489 = vmatprep.subr.mxu0 0.0
  %490 = vmatpush1.msra.mxu0 0.0
  %491 = vmatprep.subr.mxu0 0.0
  %492 = vmatpush1.msra.mxu0 0.0
  %493 = vmatprep.subr.mxu0 0.0
  %494 = vmatpush1.msra.mxu0 0.0
  %495 = vmatprep.subr.mxu0 0.0
  %496 = vmatpush1.msra.mxu0 0.0
  %497 = vmatprep.subr.mxu0 0.0
  %498 = vmatpush1.msra.mxu0 0.0
  %499 = vmatprep.subr.mxu0 0.0
  %500 = vmatpush1.msra.mxu0 0.0
  %501 = vmatprep.subr.mxu0 0.0
  %502 = vmatpush1.msra.mxu0 %v475
  %503 = vmatprep.subr.mxu0 0.0
  %504 = vmatpush1.msra.mxu0 %v474
  %505 = vmatprep.subr.mxu0 0.0
  %506 = vmatpush1.msra.mxu0 %v473
  %507 = vmatprep.subr.mxu0 0.0
  %508 = vmatpush1.msra.mxu0 %v472
  %509 = vmatprep.subr.mxu0 0.0
  %510 = vmatpush1.msra.mxu0 %v471
  %511 = vmatprep.subr.mxu0 0.0
  %512 = vmatpush2.msra.mxu0 0.0
  %513 = vmatprep.subr.mxu0 0.0
  %514 = vmatpush2.msra.mxu0 0.0
  %515 = vmatprep.subr.mxu0 0.0
  %516 = vmatpush2.msra.mxu0 0.0
  %517 = vmatprep.subr.mxu0 0.0
  %518 = vmatpush2.msra.mxu0 0.0
  %519 = vmatprep.subr.mxu0 0.0
  %520 = vmatpush2.msra.mxu0 0.0
  %521 = vmatprep.subr.mxu0 0.0
  %522 = vmatpush2.msra.mxu0 0.0
  %523 = vmatprep.subr.mxu0 0.0
  %524 = vmatpush2.msra.mxu0 0.0
  %525 = vmatprep.subr.mxu0 0.0
  %526 = vmatpush2.msra.mxu0 0.0
  %527 = vmatprep.subr.mxu0 0.0
  %528 = vmatpush2.msra.mxu0 0.0
  %529 = vmatprep.subr.mxu0 0.0
  %530 = vmatpush2.msra.mxu0 0.0
  %531 = vmatprep.subr.mxu0 0.0
  %532 = vmatpush2.msra.mxu0 0.0
  %533 = vmatprep.subr.mxu0 0.0
  %534 = vmatpush2.msra.mxu0 0.0
  %535 = vmatprep.subr.mxu0 0.0
  %536 = vmatpush2.msra.mxu0 0.0
  %537 = vmatprep.subr.mxu0 0.0
  %538 = vmatpush2.msra.mxu0 0.0
  %539 = vmatprep.subr.mxu0 0.0
  %540 = vmatpush2.msra.mxu0 0.0
  %541 = vmatprep.subr.mxu0 0.0
  %542 = vmatpush2.msra.mxu0 0.0
  %543 = vmatprep.mubr.f32.mxu0 0.0
  %544 = vmatmul.mubr.f32.gmra.mxu0 %v477
  %v545 = vpop.f32.mrf.mxu0
  %v546 = vadd.f32 0.0, %v545
  %v547 = vpop.f32.mrf.mxu0
  %548 = vdwg.mxu0
  %v549 = vmax.f32 %v546, 1e-30
  %v550 = vlog2.pop %v549
  %v551 = vmul.f32 %v550, 0.6931472
  %v552 = vadd.f32 %v551, %v451
  %vm553 = vcmp.eq.s32.totalorder %v124, %v460
  %v554 = vsel %vm553, 1, 0
  %v555 = vcvt.s32.f32 %v554
  %v556 = vcvt.s32.f32 %v43
  %vm557 = vcmask 39936
  %v559 = vsel %vm557, %v556, 0
  %vm561 = vcmask 1044480
  %v563 = vsel %vm561, %v555, 0
  %565 = vmatprep.subr.mxu0 0.0
  %566 = vmatpush1.msra.mxu0 0.0
  %567 = vmatprep.subr.mxu0 0.0
  %568 = vmatpush1.msra.mxu0 0.0
  %569 = vmatprep.subr.mxu0 0.0
  %570 = vmatpush1.msra.mxu0 0.0
  %571 = vmatprep.subr.mxu0 0.0
  %572 = vmatpush1.msra.mxu0 0.0
  %573 = vmatprep.subr.mxu0 0.0
  %574 = vmatpush1.msra.mxu0 0.0
  %575 = vmatprep.subr.mxu0 0.0
  %576 = vmatpush1.msra.mxu0 0.0
  %577 = vmatprep.subr.mxu0 0.0
  %578 = vmatpush1.msra.mxu0 0.0
  %579 = vmatprep.subr.mxu0 0.0
  %580 = vmatpush1.msra.mxu0 0.0
  %581 = vmatprep.subr.mxu0 0.0
  %582 = vmatpush1.msra.mxu0 0.0
  %583 = vmatprep.subr.mxu0 0.0
  %584 = vmatpush1.msra.mxu0 0.0
  %585 = vmatprep.subr.mxu0 0.0
  %586 = vmatpush1.msra.mxu0 0.0
  %587 = vmatprep.subr.mxu0 0.0
  %588 = vmatpush1.msra.mxu0 0.0
  %589 = vmatprep.subr.mxu0 0.0
  %590 = vmatpush1.msra.mxu0 0.0
  %591 = vmatprep.subr.mxu0 0.0
  %592 = vmatpush1.msra.mxu0 0.0
  %593 = vmatprep.subr.mxu0 0.0
  %594 = vmatpush1.msra.mxu0 0.0
  %595 = vmatprep.subr.mxu0 0.0
  %596 = vmatpush1.msra.mxu0 %v563
  %597 = vmatprep.subr.mxu0 0.0
  %598 = vmatpush2.msra.mxu0 0.0
  %599 = vmatprep.subr.mxu0 0.0
  %600 = vmatpush2.msra.mxu0 0.0
  %601 = vmatprep.subr.mxu0 0.0
  %602 = vmatpush2.msra.mxu0 0.0
  %603 = vmatprep.subr.mxu0 0.0
  %604 = vmatpush2.msra.mxu0 0.0
  %605 = vmatprep.subr.mxu0 0.0
  %606 = vmatpush2.msra.mxu0 0.0
  %607 = vmatprep.subr.mxu0 0.0
  %608 = vmatpush2.msra.mxu0 0.0
  %609 = vmatprep.subr.mxu0 0.0
  %610 = vmatpush2.msra.mxu0 0.0
  %611 = vmatprep.subr.mxu0 0.0
  %612 = vmatpush2.msra.mxu0 0.0
  %613 = vmatprep.subr.mxu0 0.0
  %614 = vmatpush2.msra.mxu0 0.0
  %615 = vmatprep.subr.mxu0 0.0
  %616 = vmatpush2.msra.mxu0 0.0
  %617 = vmatprep.subr.mxu0 0.0
  %618 = vmatpush2.msra.mxu0 0.0
  %619 = vmatprep.subr.mxu0 0.0
  %620 = vmatpush2.msra.mxu0 0.0
  %621 = vmatprep.subr.mxu0 0.0
  %622 = vmatpush2.msra.mxu0 0.0
  %623 = vmatprep.subr.mxu0 0.0
  %624 = vmatpush2.msra.mxu0 0.0
  %625 = vmatprep.subr.mxu0 0.0
  %626 = vmatpush2.msra.mxu0 0.0
  %627 = vmatprep.subr.mxu0 0.0
  %628 = vmatpush2.msra.mxu0 0.0
  %629 = vmatprep.mubr.f32.mxu0 0.0
  %630 = vmatmul.mubr.f32.gmra.mxu0 %v559
  %v631 = vpop.f32.mrf.mxu0
  %v632 = vadd.f32 0.0, %v631
  %v633 = vpop.f32.mrf.mxu0
  %634 = vdwg.mxu0
  %v635 = vand.u32 %v141, 7
  %v636 = vcvt.s32.f32 %v635
  %vm637 = vcmp.eq.f32.partialorder %v636, %v632
  %v638 = vsel %vm637, 1, 0
  %v639 = vcvt.s32.f32 %v638
  %v640 = vsub.f32 %v552, %v445
  %v641 = vmul.f32 %v639, %v640
  %v642 = vmul.f32 %v639, %v445
  %v644 = vsel %vm448, %v642, 0
  %646 = vmatprep.subr.mxu0 0.0
  %647 = vmatpush1.msra.mxu0 0.0
  %648 = vmatprep.subr.mxu0 0.0
  %649 = vmatpush1.msra.mxu0 0.0
  %650 = vmatprep.subr.mxu0 0.0
  %651 = vmatpush1.msra.mxu0 0.0
  %652 = vmatprep.subr.mxu0 0.0
  %653 = vmatpush1.msra.mxu0 0.0
  %654 = vmatprep.subr.mxu0 0.0
  %655 = vmatpush1.msra.mxu0 0.0
  %656 = vmatprep.subr.mxu0 0.0
  %657 = vmatpush1.msra.mxu0 0.0
  %658 = vmatprep.subr.mxu0 0.0
  %659 = vmatpush1.msra.mxu0 0.0
  %660 = vmatprep.subr.mxu0 0.0
  %661 = vmatpush1.msra.mxu0 0.0
  %662 = vmatprep.subr.mxu0 0.0
  %663 = vmatpush1.msra.mxu0 0.0
  %664 = vmatprep.subr.mxu0 0.0
  %665 = vmatpush1.msra.mxu0 0.0
  %666 = vmatprep.subr.mxu0 0.0
  %667 = vmatpush1.msra.mxu0 0.0
  %668 = vmatprep.subr.mxu0 0.0
  %669 = vmatpush1.msra.mxu0 %v475
  %670 = vmatprep.subr.mxu0 0.0
  %671 = vmatpush1.msra.mxu0 %v474
  %672 = vmatprep.subr.mxu0 0.0
  %673 = vmatpush1.msra.mxu0 %v473
  %674 = vmatprep.subr.mxu0 0.0
  %675 = vmatpush1.msra.mxu0 %v472
  %676 = vmatprep.subr.mxu0 0.0
  %677 = vmatpush1.msra.mxu0 %v471
  %678 = vmatprep.subr.mxu0 0.0
  %679 = vmatpush2.msra.mxu0 0.0
  %680 = vmatprep.subr.mxu0 0.0
  %681 = vmatpush2.msra.mxu0 0.0
  %682 = vmatprep.subr.mxu0 0.0
  %683 = vmatpush2.msra.mxu0 0.0
  %684 = vmatprep.subr.mxu0 0.0
  %685 = vmatpush2.msra.mxu0 0.0
  %686 = vmatprep.subr.mxu0 0.0
  %687 = vmatpush2.msra.mxu0 0.0
  %688 = vmatprep.subr.mxu0 0.0
  %689 = vmatpush2.msra.mxu0 0.0
  %690 = vmatprep.subr.mxu0 0.0
  %691 = vmatpush2.msra.mxu0 0.0
  %692 = vmatprep.subr.mxu0 0.0
  %693 = vmatpush2.msra.mxu0 0.0
  %694 = vmatprep.subr.mxu0 0.0
  %695 = vmatpush2.msra.mxu0 0.0
  %696 = vmatprep.subr.mxu0 0.0
  %697 = vmatpush2.msra.mxu0 0.0
  %698 = vmatprep.subr.mxu0 0.0
  %699 = vmatpush2.msra.mxu0 0.0
  %700 = vmatprep.subr.mxu0 0.0
  %701 = vmatpush2.msra.mxu0 0.0
  %702 = vmatprep.subr.mxu0 0.0
  %703 = vmatpush2.msra.mxu0 0.0
  %704 = vmatprep.subr.mxu0 0.0
  %705 = vmatpush2.msra.mxu0 0.0
  %706 = vmatprep.subr.mxu0 0.0
  %707 = vmatpush2.msra.mxu0 0.0
  %708 = vmatprep.subr.mxu0 0.0
  %709 = vmatpush2.msra.mxu0 0.0
  %710 = vmatprep.mubr.f32.mxu0 0.0
  %711 = vmatmul.mubr.f32.gmra.mxu0 %v644
  %v712 = vpop.f32.mrf.mxu0
  %v713 = vadd.f32 0.0, %v712
  %v714 = vpop.f32.mrf.mxu0
  %715 = vdwg.mxu0
  %vm716 = vcmp.gt.f32.partialorder %v445, %v713
  %v717 = vsel %vm716, 1, 0
  %v718 = vcvt.s32.f32 %v717
  %vm719 = vcmp.eq.f32.partialorder %v445, %v713
  %vm720 = vcmp.lt.f32.partialorder %v636, %v632
  %vm721 = vmand %vm719, %vm720
  %v722 = vsel %vm721, 1, 0
  %v723 = vcvt.s32.f32 %v722
  %v724 = vsub.f32 1.0, %v639
  %v725 = vadd.f32 %v718, %v723
  %v726 = vmul.f32 %v724, %v725
  %vm727 = vcmp.eq.s32.totalorder %v455, %v141
  %vm728 = vcmp.eq.s32.totalorder %v456, %v141
  %vm729 = vcmp.eq.s32.totalorder %v457, %v141
  %vm730 = vcmp.eq.s32.totalorder %v458, %v141
  %vm731 = vcmp.eq.s32.totalorder %v459, %v141
  %v732 = vsel %vm727, 1, 0
  %v733 = vsel %vm728, 1, 0
  %v734 = vsel %vm729, 1, 0
  %v735 = vsel %vm730, 1, 0
  %v736 = vsel %vm731, 1, 0
  %v737 = vcvt.s32.f32 %v732
  %v738 = vcvt.s32.f32 %v733
  %v739 = vcvt.s32.f32 %v734
  %v740 = vcvt.s32.f32 %v735
  %v741 = vcvt.s32.f32 %v736
  %v743 = vsel %vm448, %v641, 0
  %745 = vmatprep.subr.mxu0 0.0
  %746 = vmatpush1.msra.mxu0 0.0
  %747 = vmatprep.subr.mxu0 0.0
  %748 = vmatpush1.msra.mxu0 0.0
  %749 = vmatprep.subr.mxu0 0.0
  %750 = vmatpush1.msra.mxu0 0.0
  %751 = vmatprep.subr.mxu0 0.0
  %752 = vmatpush1.msra.mxu0 0.0
  %753 = vmatprep.subr.mxu0 0.0
  %754 = vmatpush1.msra.mxu0 0.0
  %755 = vmatprep.subr.mxu0 0.0
  %756 = vmatpush1.msra.mxu0 0.0
  %757 = vmatprep.subr.mxu0 0.0
  %758 = vmatpush1.msra.mxu0 0.0
  %759 = vmatprep.subr.mxu0 0.0
  %760 = vmatpush1.msra.mxu0 0.0
  %761 = vmatprep.subr.mxu0 0.0
  %762 = vmatpush1.msra.mxu0 0.0
  %763 = vmatprep.subr.mxu0 0.0
  %764 = vmatpush1.msra.mxu0 0.0
  %765 = vmatprep.subr.mxu0 0.0
  %766 = vmatpush1.msra.mxu0 0.0
  %767 = vmatprep.subr.mxu0 0.0
  %768 = vmatpush1.msra.mxu0 %v741
  %769 = vmatprep.subr.mxu0 0.0
  %770 = vmatpush1.msra.mxu0 %v740
  %771 = vmatprep.subr.mxu0 0.0
  %772 = vmatpush1.msra.mxu0 %v739
  %773 = vmatprep.subr.mxu0 0.0
  %774 = vmatpush1.msra.mxu0 %v738
  %775 = vmatprep.subr.mxu0 0.0
  %776 = vmatpush1.msra.mxu0 %v737
  %777 = vmatprep.subr.mxu0 0.0
  %778 = vmatpush2.msra.mxu0 0.0
  %779 = vmatprep.subr.mxu0 0.0
  %780 = vmatpush2.msra.mxu0 0.0
  %781 = vmatprep.subr.mxu0 0.0
  %782 = vmatpush2.msra.mxu0 0.0
  %783 = vmatprep.subr.mxu0 0.0
  %784 = vmatpush2.msra.mxu0 0.0
  %785 = vmatprep.subr.mxu0 0.0
  %786 = vmatpush2.msra.mxu0 0.0
  %787 = vmatprep.subr.mxu0 0.0
  %788 = vmatpush2.msra.mxu0 0.0
  %789 = vmatprep.subr.mxu0 0.0
  %790 = vmatpush2.msra.mxu0 0.0
  %791 = vmatprep.subr.mxu0 0.0
  %792 = vmatpush2.msra.mxu0 0.0
  %793 = vmatprep.subr.mxu0 0.0
  %794 = vmatpush2.msra.mxu0 0.0
  %795 = vmatprep.subr.mxu0 0.0
  %796 = vmatpush2.msra.mxu0 0.0
  %797 = vmatprep.subr.mxu0 0.0
  %798 = vmatpush2.msra.mxu0 0.0
  %799 = vmatprep.subr.mxu0 0.0
  %800 = vmatpush2.msra.mxu0 0.0
  %801 = vmatprep.subr.mxu0 0.0
  %802 = vmatpush2.msra.mxu0 0.0
  %803 = vmatprep.subr.mxu0 0.0
  %804 = vmatpush2.msra.mxu0 0.0
  %805 = vmatprep.subr.mxu0 0.0
  %806 = vmatpush2.msra.mxu0 0.0
  %807 = vmatprep.subr.mxu0 0.0
  %808 = vmatpush2.msra.mxu0 0.0
  %809 = vmatprep.mubr.f32.mxu0 0.0
  %810 = vmatmul.mubr.f32.gmra.mxu0 %v743
  %v811 = vpop.f32.mrf.mxu0
  %v812 = vadd.f32 0.0, %v811
  %v813 = vpop.f32.mrf.mxu0
  %814 = vdwg.mxu0
  %v816 = vsel %vm448, %v726, 0
  %818 = vmatprep.subr.mxu0 0.0
  %819 = vmatpush1.msra.mxu0 0.0
  %820 = vmatprep.subr.mxu0 0.0
  %821 = vmatpush1.msra.mxu0 0.0
  %822 = vmatprep.subr.mxu0 0.0
  %823 = vmatpush1.msra.mxu0 0.0
  %824 = vmatprep.subr.mxu0 0.0
  %825 = vmatpush1.msra.mxu0 0.0
  %826 = vmatprep.subr.mxu0 0.0
  %827 = vmatpush1.msra.mxu0 0.0
  %828 = vmatprep.subr.mxu0 0.0
  %829 = vmatpush1.msra.mxu0 0.0
  %830 = vmatprep.subr.mxu0 0.0
  %831 = vmatpush1.msra.mxu0 0.0
  %832 = vmatprep.subr.mxu0 0.0
  %833 = vmatpush1.msra.mxu0 0.0
  %834 = vmatprep.subr.mxu0 0.0
  %835 = vmatpush1.msra.mxu0 0.0
  %836 = vmatprep.subr.mxu0 0.0
  %837 = vmatpush1.msra.mxu0 0.0
  %838 = vmatprep.subr.mxu0 0.0
  %839 = vmatpush1.msra.mxu0 0.0
  %840 = vmatprep.subr.mxu0 0.0
  %841 = vmatpush1.msra.mxu0 %v741
  %842 = vmatprep.subr.mxu0 0.0
  %843 = vmatpush1.msra.mxu0 %v740
  %844 = vmatprep.subr.mxu0 0.0
  %845 = vmatpush1.msra.mxu0 %v739
  %846 = vmatprep.subr.mxu0 0.0
  %847 = vmatpush1.msra.mxu0 %v738
  %848 = vmatprep.subr.mxu0 0.0
  %849 = vmatpush1.msra.mxu0 %v737
  %850 = vmatprep.subr.mxu0 0.0
  %851 = vmatpush2.msra.mxu0 0.0
  %852 = vmatprep.subr.mxu0 0.0
  %853 = vmatpush2.msra.mxu0 0.0
  %854 = vmatprep.subr.mxu0 0.0
  %855 = vmatpush2.msra.mxu0 0.0
  %856 = vmatprep.subr.mxu0 0.0
  %857 = vmatpush2.msra.mxu0 0.0
  %858 = vmatprep.subr.mxu0 0.0
  %859 = vmatpush2.msra.mxu0 0.0
  %860 = vmatprep.subr.mxu0 0.0
  %861 = vmatpush2.msra.mxu0 0.0
  %862 = vmatprep.subr.mxu0 0.0
  %863 = vmatpush2.msra.mxu0 0.0
  %864 = vmatprep.subr.mxu0 0.0
  %865 = vmatpush2.msra.mxu0 0.0
  %866 = vmatprep.subr.mxu0 0.0
  %867 = vmatpush2.msra.mxu0 0.0
  %868 = vmatprep.subr.mxu0 0.0
  %869 = vmatpush2.msra.mxu0 0.0
  %870 = vmatprep.subr.mxu0 0.0
  %871 = vmatpush2.msra.mxu0 0.0
  %872 = vmatprep.subr.mxu0 0.0
  %873 = vmatpush2.msra.mxu0 0.0
  %874 = vmatprep.subr.mxu0 0.0
  %875 = vmatpush2.msra.mxu0 0.0
  %876 = vmatprep.subr.mxu0 0.0
  %877 = vmatpush2.msra.mxu0 0.0
  %878 = vmatprep.subr.mxu0 0.0
  %879 = vmatpush2.msra.mxu0 0.0
  %880 = vmatprep.subr.mxu0 0.0
  %881 = vmatpush2.msra.mxu0 0.0
  %882 = vmatprep.mubr.f32.mxu0 0.0
  %883 = vmatmul.mubr.f32.gmra.mxu0 %v816
  %v884 = vpop.f32.mrf.mxu0
  %v885 = vadd.f32 0.0, %v884
  %v886 = vpop.f32.mrf.mxu0
  %887 = vdwg.mxu0
  %vm888 = vcmp.eq.f32.partialorder %v885, 0.0
  %v889 = vsel %vm888, 1, 0
  %v890 = vcvt.s32.f32 %v889
  %v891 = vsel %vm557, %v812, 0.0
  %v892 = vrot.slane %v891, 4
  %v893 = vadd.f32 %v891, %v892
  %v894 = vrot.slane %v893, 2
  %v895 = vadd.f32 %v893, %v894
  %v896 = vrot.slane %v895, 1
  %v897 = vadd.f32 %v895, %v896
  %v898 = vmul.f32 %v897, 0.125
  %v899 = vsel %vm557, %v890, 0.0
  %v900 = vrot.slane %v899, 4
  %v901 = vadd.f32 %v899, %v900
  %v902 = vrot.slane %v901, 2
  %v903 = vadd.f32 %v901, %v902
  %v904 = vrot.slane %v903, 1
  %v905 = vadd.f32 %v903, %v904
  %v906 = vmul.f32 %v905, 0.125
  %v907 = vsel %vm557, %v898, 0.0
  %908 = vadd.xlane.f32.xlu0 %v907
  %v909 = vpop.xlane.xlu0 %908
  %v910 = vand.u32 %v141, 31
  %vm911 = vcmp.eq.s32.totalorder %v124, %v910
  %vm912 = vcmp.eq.s32.totalorder %v125, %v910
  %vm913 = vcmp.eq.s32.totalorder %v126, %v910
  %vm914 = vcmp.eq.s32.totalorder %v127, %v910
  %v915 = vsel %vm911, 1, 0
  %v916 = vsel %vm912, 1, 0
  %v917 = vsel %vm913, 1, 0
  %v918 = vsel %vm914, 1, 0
  %v919 = vcvt.s32.f32 %v915
  %v920 = vcvt.s32.f32 %v916
  %v921 = vcvt.s32.f32 %v917
  %v922 = vcvt.s32.f32 %v918
  %923 = vmatprep.subr.mxu0 0.0
  %924 = vmatpush1.msra.mxu0 0.0
  %925 = vmatprep.subr.mxu0 0.0
  %926 = vmatpush1.msra.mxu0 0.0
  %927 = vmatprep.subr.mxu0 0.0
  %928 = vmatpush1.msra.mxu0 0.0
  %929 = vmatprep.subr.mxu0 0.0
  %930 = vmatpush1.msra.mxu0 0.0
  %931 = vmatprep.subr.mxu0 0.0
  %932 = vmatpush1.msra.mxu0 0.0
  %933 = vmatprep.subr.mxu0 0.0
  %934 = vmatpush1.msra.mxu0 0.0
  %935 = vmatprep.subr.mxu0 0.0
  %936 = vmatpush1.msra.mxu0 0.0
  %937 = vmatprep.subr.mxu0 0.0
  %938 = vmatpush1.msra.mxu0 0.0
  %939 = vmatprep.subr.mxu0 0.0
  %940 = vmatpush1.msra.mxu0 0.0
  %941 = vmatprep.subr.mxu0 0.0
  %942 = vmatpush1.msra.mxu0 0.0
  %943 = vmatprep.subr.mxu0 0.0
  %944 = vmatpush1.msra.mxu0 0.0
  %945 = vmatprep.subr.mxu0 0.0
  %946 = vmatpush1.msra.mxu0 0.0
  %947 = vmatprep.subr.mxu0 0.0
  %948 = vmatpush1.msra.mxu0 %v922
  %949 = vmatprep.subr.mxu0 0.0
  %950 = vmatpush1.msra.mxu0 %v921
  %951 = vmatprep.subr.mxu0 0.0
  %952 = vmatpush1.msra.mxu0 %v920
  %953 = vmatprep.subr.mxu0 0.0
  %954 = vmatpush1.msra.mxu0 %v919
  %955 = vmatprep.subr.mxu0 0.0
  %956 = vmatpush2.msra.mxu0 0.0
  %957 = vmatprep.subr.mxu0 0.0
  %958 = vmatpush2.msra.mxu0 0.0
  %959 = vmatprep.subr.mxu0 0.0
  %960 = vmatpush2.msra.mxu0 0.0
  %961 = vmatprep.subr.mxu0 0.0
  %962 = vmatpush2.msra.mxu0 0.0
  %963 = vmatprep.subr.mxu0 0.0
  %964 = vmatpush2.msra.mxu0 0.0
  %965 = vmatprep.subr.mxu0 0.0
  %966 = vmatpush2.msra.mxu0 0.0
  %967 = vmatprep.subr.mxu0 0.0
  %968 = vmatpush2.msra.mxu0 0.0
  %969 = vmatprep.subr.mxu0 0.0
  %970 = vmatpush2.msra.mxu0 0.0
  %971 = vmatprep.subr.mxu0 0.0
  %972 = vmatpush2.msra.mxu0 0.0
  %973 = vmatprep.subr.mxu0 0.0
  %974 = vmatpush2.msra.mxu0 0.0
  %975 = vmatprep.subr.mxu0 0.0
  %976 = vmatpush2.msra.mxu0 0.0
  %977 = vmatprep.subr.mxu0 0.0
  %978 = vmatpush2.msra.mxu0 0.0
  %979 = vmatprep.subr.mxu0 0.0
  %980 = vmatpush2.msra.mxu0 0.0
  %981 = vmatprep.subr.mxu0 0.0
  %982 = vmatpush2.msra.mxu0 0.0
  %983 = vmatprep.subr.mxu0 0.0
  %984 = vmatpush2.msra.mxu0 0.0
  %985 = vmatprep.subr.mxu0 0.0
  %986 = vmatpush2.msra.mxu0 0.0
  %987 = vmatprep.mubr.f32.mxu0 0.0
  %988 = vmatmul.mubr.f32.gmra.mxu0 %v376
  %v989 = vpop.f32.mrf.mxu0
  %v990 = vadd.f32 0.0, %v989
  %v991 = vpop.f32.mrf.mxu0
  %992 = vdwg.mxu0
  %v993 = vshra.s32 %v124, 5
  %v994 = vshra.s32 %v125, 5
  %v995 = vshra.s32 %v126, 5
  %v996 = vshra.s32 %v127, 5
  %v997 = vshra.s32 %v128, 5
  %v998 = vshra.s32 %v129, 5
  %v999 = vshra.s32 %v130, 5
  %v1000 = vshra.s32 %v131, 5
  %v1001 = vshra.s32 %v132, 5
  %v1002 = vshra.s32 %v133, 5
  %v1003 = vshra.s32 %v134, 5
  %v1004 = vshra.s32 %v135, 5
  %v1005 = vshra.s32 %v136, 5
  %v1006 = vshra.s32 %v137, 5
  %v1007 = vshra.s32 %v138, 5
  %v1008 = vshra.s32 %v139, 5
  %vm1009 = vcmp.eq.s32.totalorder %v993, %v141
  %vm1010 = vcmp.eq.s32.totalorder %v994, %v141
  %vm1011 = vcmp.eq.s32.totalorder %v995, %v141
  %vm1012 = vcmp.eq.s32.totalorder %v996, %v141
  %vm1013 = vcmp.eq.s32.totalorder %v997, %v141
  %vm1014 = vcmp.eq.s32.totalorder %v998, %v141
  %vm1015 = vcmp.eq.s32.totalorder %v999, %v141
  %vm1016 = vcmp.eq.s32.totalorder %v1000, %v141
  %vm1017 = vcmp.eq.s32.totalorder %v1001, %v141
  %vm1018 = vcmp.eq.s32.totalorder %v1002, %v141
  %vm1019 = vcmp.eq.s32.totalorder %v1003, %v141
  %vm1020 = vcmp.eq.s32.totalorder %v1004, %v141
  %vm1021 = vcmp.eq.s32.totalorder %v1005, %v141
  %vm1022 = vcmp.eq.s32.totalorder %v1006, %v141
  %vm1023 = vcmp.eq.s32.totalorder %v1007, %v141
  %vm1024 = vcmp.eq.s32.totalorder %v1008, %v141
  %v1025 = vsel %vm1009, 1, 0
  %v1026 = vsel %vm1010, 1, 0
  %v1027 = vsel %vm1011, 1, 0
  %v1028 = vsel %vm1012, 1, 0
  %v1029 = vsel %vm1013, 1, 0
  %v1030 = vsel %vm1014, 1, 0
  %v1031 = vsel %vm1015, 1, 0
  %v1032 = vsel %vm1016, 1, 0
  %v1033 = vsel %vm1017, 1, 0
  %v1034 = vsel %vm1018, 1, 0
  %v1035 = vsel %vm1019, 1, 0
  %v1036 = vsel %vm1020, 1, 0
  %v1037 = vsel %vm1021, 1, 0
  %v1038 = vsel %vm1022, 1, 0
  %v1039 = vsel %vm1023, 1, 0
  %v1040 = vsel %vm1024, 1, 0
  %v1041 = vcvt.s32.f32 %v1025
  %v1042 = vcvt.s32.f32 %v1026
  %v1043 = vcvt.s32.f32 %v1027
  %v1044 = vcvt.s32.f32 %v1028
  %v1045 = vcvt.s32.f32 %v1029
  %v1046 = vcvt.s32.f32 %v1030
  %v1047 = vcvt.s32.f32 %v1031
  %v1048 = vcvt.s32.f32 %v1032
  %v1049 = vcvt.s32.f32 %v1033
  %v1050 = vcvt.s32.f32 %v1034
  %v1051 = vcvt.s32.f32 %v1035
  %v1052 = vcvt.s32.f32 %v1036
  %v1053 = vcvt.s32.f32 %v1037
  %v1054 = vcvt.s32.f32 %v1038
  %v1055 = vcvt.s32.f32 %v1039
  %v1056 = vcvt.s32.f32 %v1040
  %v1057 = vmul.f32 %v16, %v990
  %1058 = vmatprep.subr.mxu0 0.0
  %1059 = vmatpush1.msra.mxu0 %v1056
  %1060 = vmatprep.subr.mxu0 0.0
  %1061 = vmatpush1.msra.mxu0 %v1055
  %1062 = vmatprep.subr.mxu0 0.0
  %1063 = vmatpush1.msra.mxu0 %v1054
  %1064 = vmatprep.subr.mxu0 0.0
  %1065 = vmatpush1.msra.mxu0 %v1053
  %1066 = vmatprep.subr.mxu0 0.0
  %1067 = vmatpush1.msra.mxu0 %v1052
  %1068 = vmatprep.subr.mxu0 0.0
  %1069 = vmatpush1.msra.mxu0 %v1051
  %1070 = vmatprep.subr.mxu0 0.0
  %1071 = vmatpush1.msra.mxu0 %v1050
  %1072 = vmatprep.subr.mxu0 0.0
  %1073 = vmatpush1.msra.mxu0 %v1049
  %1074 = vmatprep.subr.mxu0 0.0
  %1075 = vmatpush1.msra.mxu0 %v1048
  %1076 = vmatprep.subr.mxu0 0.0
  %1077 = vmatpush1.msra.mxu0 %v1047
  %1078 = vmatprep.subr.mxu0 0.0
  %1079 = vmatpush1.msra.mxu0 %v1046
  %1080 = vmatprep.subr.mxu0 0.0
  %1081 = vmatpush1.msra.mxu0 %v1045
  %1082 = vmatprep.subr.mxu0 0.0
  %1083 = vmatpush1.msra.mxu0 %v1044
  %1084 = vmatprep.subr.mxu0 0.0
  %1085 = vmatpush1.msra.mxu0 %v1043
  %1086 = vmatprep.subr.mxu0 0.0
  %1087 = vmatpush1.msra.mxu0 %v1042
  %1088 = vmatprep.subr.mxu0 0.0
  %1089 = vmatpush1.msra.mxu0 %v1041
  %1090 = vmatprep.subr.mxu0 0.0
  %1091 = vmatpush2.msra.mxu0 0.0
  %1092 = vmatprep.subr.mxu0 0.0
  %1093 = vmatpush2.msra.mxu0 0.0
  %1094 = vmatprep.subr.mxu0 0.0
  %1095 = vmatpush2.msra.mxu0 0.0
  %1096 = vmatprep.subr.mxu0 0.0
  %1097 = vmatpush2.msra.mxu0 0.0
  %1098 = vmatprep.subr.mxu0 0.0
  %1099 = vmatpush2.msra.mxu0 0.0
  %1100 = vmatprep.subr.mxu0 0.0
  %1101 = vmatpush2.msra.mxu0 0.0
  %1102 = vmatprep.subr.mxu0 0.0
  %1103 = vmatpush2.msra.mxu0 0.0
  %1104 = vmatprep.subr.mxu0 0.0
  %1105 = vmatpush2.msra.mxu0 0.0
  %1106 = vmatprep.subr.mxu0 0.0
  %1107 = vmatpush2.msra.mxu0 0.0
  %1108 = vmatprep.subr.mxu0 0.0
  %1109 = vmatpush2.msra.mxu0 0.0
  %1110 = vmatprep.subr.mxu0 0.0
  %1111 = vmatpush2.msra.mxu0 0.0
  %1112 = vmatprep.subr.mxu0 0.0
  %1113 = vmatpush2.msra.mxu0 0.0
  %1114 = vmatprep.subr.mxu0 0.0
  %1115 = vmatpush2.msra.mxu0 0.0
  %1116 = vmatprep.subr.mxu0 0.0
  %1117 = vmatpush2.msra.mxu0 0.0
  %1118 = vmatprep.subr.mxu0 0.0
  %1119 = vmatpush2.msra.mxu0 0.0
  %1120 = vmatprep.subr.mxu0 0.0
  %1121 = vmatpush2.msra.mxu0 0.0
  %1122 = vmatprep.mubr.f32.mxu0 0.0
  %1123 = vmatmul.mubr.f32.gmra.mxu0 %v1057
  %v1124 = vpop.f32.mrf.mxu0
  %v1125 = vadd.f32 0.0, %v1124
  %v1126 = vpop.f32.mrf.mxu0
  %1127 = vdwg.mxu0
  %v1128 = vsub.f32 1.0, %v1125
  %1130 = vset.pattern.permute.xlu0 0
  %1131 = vperm.xlu0 %1130, %v1128
  %v1132 = vpop.permute.xlu0 %1131
  %v1134 = vadd.f32 %v1132, %v1125
  %v1135 = vmax.f32 %v1134, 0.0
  %1137 = vrot.lane.b32.xlu0 %v1135, 127
  %v1138 = vpop.permute.xlu0 %1137
  %vm1140 = vcmask 23552
  %v1141 = vsel %vm1140, %v1138, 0.0
  %1142 = vadd.xlane.f32.xlu0 %v1141
  %v1143 = vpop.xlane.xlu0 %1142
  %vm1144 = vcmask 31752
  %v1145 = vsel %vm1144, %v1125, -inf
  %1146 = vmax.xlane.f32.xlu0 %v1145
  %v1147 = vpop.xlane.xlu0 %1146
  %vm1148 = vcmp.ge.f32.partialorder %v1125, %v1147
  %v1149 = vsel %vm1148, 1, 0
  %v1150 = vcvt.s32.f32 %v1149
  %v1151 = vrot.slane %v1143, 4
  %v1152 = vadd.f32 %v1143, %v1151
  %v1153 = vrot.slane %v1152, 2
  %v1154 = vadd.f32 %v1152, %v1153
  %v1155 = vrot.slane %v1154, 1
  %v1156 = vadd.f32 %v1154, %v1155
  %v1157 = vmul.f32 %v1156, 0.125
  %vm1158 = vcmask 7168
  %v1159 = vsel %vm1158, %v1150, 0.0
  %v1160 = vrot.slane %v1159, 4
  %v1161 = vadd.f32 %v1159, %v1160
  %v1162 = vrot.slane %v1161, 2
  %v1163 = vadd.f32 %v1161, %v1162
  %v1164 = vrot.slane %v1163, 1
  %v1165 = vadd.f32 %v1163, %v1164
  %v1166 = vmul.f32 %v1165, 0.125
  %v1167 = vmul.f32 %v909, 0.5
  %v1168 = vmul.f32 %v1157, 0.5
  %v1169 = vadd.f32 %v1167, %v1168
  %vm1170 = vcmp.eq.s32.totalorder %v141, %v124
  %v1171 = vsel %vm1170, 1, 0
  %v1172 = vcvt.s32.f32 %v1171
  %v1173 = vadd.s32 %v124, 5
  %vm1174 = vcmp.eq.s32.totalorder %v141, %v1173
  %v1175 = vsel %vm1174, 1, 0
  %v1176 = vcvt.s32.f32 %v1175
  %v1178 = vsel %vm557, %v906, 0
  %v1181 = vsel %vm561, %v1176, 0
  %1183 = vmatprep.subr.mxu0 0.0
  %1184 = vmatpush1.msra.mxu0 0.0
  %1185 = vmatprep.subr.mxu0 0.0
  %1186 = vmatpush1.msra.mxu0 0.0
  %1187 = vmatprep.subr.mxu0 0.0
  %1188 = vmatpush1.msra.mxu0 0.0
  %1189 = vmatprep.subr.mxu0 0.0
  %1190 = vmatpush1.msra.mxu0 0.0
  %1191 = vmatprep.subr.mxu0 0.0
  %1192 = vmatpush1.msra.mxu0 0.0
  %1193 = vmatprep.subr.mxu0 0.0
  %1194 = vmatpush1.msra.mxu0 0.0
  %1195 = vmatprep.subr.mxu0 0.0
  %1196 = vmatpush1.msra.mxu0 0.0
  %1197 = vmatprep.subr.mxu0 0.0
  %1198 = vmatpush1.msra.mxu0 0.0
  %1199 = vmatprep.subr.mxu0 0.0
  %1200 = vmatpush1.msra.mxu0 0.0
  %1201 = vmatprep.subr.mxu0 0.0
  %1202 = vmatpush1.msra.mxu0 0.0
  %1203 = vmatprep.subr.mxu0 0.0
  %1204 = vmatpush1.msra.mxu0 0.0
  %1205 = vmatprep.subr.mxu0 0.0
  %1206 = vmatpush1.msra.mxu0 0.0
  %1207 = vmatprep.subr.mxu0 0.0
  %1208 = vmatpush1.msra.mxu0 0.0
  %1209 = vmatprep.subr.mxu0 0.0
  %1210 = vmatpush1.msra.mxu0 0.0
  %1211 = vmatprep.subr.mxu0 0.0
  %1212 = vmatpush1.msra.mxu0 0.0
  %1213 = vmatprep.subr.mxu0 0.0
  %1214 = vmatpush1.msra.mxu0 %v1181
  %1215 = vmatprep.subr.mxu0 0.0
  %1216 = vmatpush2.msra.mxu0 0.0
  %1217 = vmatprep.subr.mxu0 0.0
  %1218 = vmatpush2.msra.mxu0 0.0
  %1219 = vmatprep.subr.mxu0 0.0
  %1220 = vmatpush2.msra.mxu0 0.0
  %1221 = vmatprep.subr.mxu0 0.0
  %1222 = vmatpush2.msra.mxu0 0.0
  %1223 = vmatprep.subr.mxu0 0.0
  %1224 = vmatpush2.msra.mxu0 0.0
  %1225 = vmatprep.subr.mxu0 0.0
  %1226 = vmatpush2.msra.mxu0 0.0
  %1227 = vmatprep.subr.mxu0 0.0
  %1228 = vmatpush2.msra.mxu0 0.0
  %1229 = vmatprep.subr.mxu0 0.0
  %1230 = vmatpush2.msra.mxu0 0.0
  %1231 = vmatprep.subr.mxu0 0.0
  %1232 = vmatpush2.msra.mxu0 0.0
  %1233 = vmatprep.subr.mxu0 0.0
  %1234 = vmatpush2.msra.mxu0 0.0
  %1235 = vmatprep.subr.mxu0 0.0
  %1236 = vmatpush2.msra.mxu0 0.0
  %1237 = vmatprep.subr.mxu0 0.0
  %1238 = vmatpush2.msra.mxu0 0.0
  %1239 = vmatprep.subr.mxu0 0.0
  %1240 = vmatpush2.msra.mxu0 0.0
  %1241 = vmatprep.subr.mxu0 0.0
  %1242 = vmatpush2.msra.mxu0 0.0
  %1243 = vmatprep.subr.mxu0 0.0
  %1244 = vmatpush2.msra.mxu0 0.0
  %1245 = vmatprep.subr.mxu0 0.0
  %1246 = vmatpush2.msra.mxu0 0.0
  %1247 = vmatprep.mubr.f32.mxu0 0.0
  %1248 = vmatmul.mubr.f32.gmra.mxu0 %v1178
  %v1249 = vpop.f32.mrf.mxu0
  %v1250 = vadd.f32 0.0, %v1249
  %v1251 = vpop.f32.mrf.mxu0
  %1252 = vdwg.mxu0
  %v1254 = vsel %vm557, %v898, 0
  %v1257 = vsel %vm561, %v1172, 0
  %1259 = vmatprep.subr.mxu0 0.0
  %1260 = vmatpush1.msra.mxu0 0.0
  %1261 = vmatprep.subr.mxu0 0.0
  %1262 = vmatpush1.msra.mxu0 0.0
  %1263 = vmatprep.subr.mxu0 0.0
  %1264 = vmatpush1.msra.mxu0 0.0
  %1265 = vmatprep.subr.mxu0 0.0
  %1266 = vmatpush1.msra.mxu0 0.0
  %1267 = vmatprep.subr.mxu0 0.0
  %1268 = vmatpush1.msra.mxu0 0.0
  %1269 = vmatprep.subr.mxu0 0.0
  %1270 = vmatpush1.msra.mxu0 0.0
  %1271 = vmatprep.subr.mxu0 0.0
  %1272 = vmatpush1.msra.mxu0 0.0
  %1273 = vmatprep.subr.mxu0 0.0
  %1274 = vmatpush1.msra.mxu0 0.0
  %1275 = vmatprep.subr.mxu0 0.0
  %1276 = vmatpush1.msra.mxu0 0.0
  %1277 = vmatprep.subr.mxu0 0.0
  %1278 = vmatpush1.msra.mxu0 0.0
  %1279 = vmatprep.subr.mxu0 0.0
  %1280 = vmatpush1.msra.mxu0 0.0
  %1281 = vmatprep.subr.mxu0 0.0
  %1282 = vmatpush1.msra.mxu0 0.0
  %1283 = vmatprep.subr.mxu0 0.0
  %1284 = vmatpush1.msra.mxu0 0.0
  %1285 = vmatprep.subr.mxu0 0.0
  %1286 = vmatpush1.msra.mxu0 0.0
  %1287 = vmatprep.subr.mxu0 0.0
  %1288 = vmatpush1.msra.mxu0 0.0
  %1289 = vmatprep.subr.mxu0 0.0
  %1290 = vmatpush1.msra.mxu0 %v1257
  %1291 = vmatprep.subr.mxu0 0.0
  %1292 = vmatpush2.msra.mxu0 0.0
  %1293 = vmatprep.subr.mxu0 0.0
  %1294 = vmatpush2.msra.mxu0 0.0
  %1295 = vmatprep.subr.mxu0 0.0
  %1296 = vmatpush2.msra.mxu0 0.0
  %1297 = vmatprep.subr.mxu0 0.0
  %1298 = vmatpush2.msra.mxu0 0.0
  %1299 = vmatprep.subr.mxu0 0.0
  %1300 = vmatpush2.msra.mxu0 0.0
  %1301 = vmatprep.subr.mxu0 0.0
  %1302 = vmatpush2.msra.mxu0 0.0
  %1303 = vmatprep.subr.mxu0 0.0
  %1304 = vmatpush2.msra.mxu0 0.0
  %1305 = vmatprep.subr.mxu0 0.0
  %1306 = vmatpush2.msra.mxu0 0.0
  %1307 = vmatprep.subr.mxu0 0.0
  %1308 = vmatpush2.msra.mxu0 0.0
  %1309 = vmatprep.subr.mxu0 0.0
  %1310 = vmatpush2.msra.mxu0 0.0
  %1311 = vmatprep.subr.mxu0 0.0
  %1312 = vmatpush2.msra.mxu0 0.0
  %1313 = vmatprep.subr.mxu0 0.0
  %1314 = vmatpush2.msra.mxu0 0.0
  %1315 = vmatprep.subr.mxu0 0.0
  %1316 = vmatpush2.msra.mxu0 0.0
  %1317 = vmatprep.subr.mxu0 0.0
  %1318 = vmatpush2.msra.mxu0 0.0
  %1319 = vmatprep.subr.mxu0 0.0
  %1320 = vmatpush2.msra.mxu0 0.0
  %1321 = vmatprep.subr.mxu0 0.0
  %1322 = vmatpush2.msra.mxu0 0.0
  %1323 = vmatprep.mubr.f32.mxu0 0.0
  %1324 = vmatmul.mubr.f32.gmra.mxu0 %v1254
  %v1325 = vpop.f32.mrf.mxu0
  %v1326 = vadd.f32 %v1250, %v1325
  %v1327 = vpop.f32.mrf.mxu0
  %1328 = vdwg.mxu0
  %vm1329 = vcmp.eq.s32.totalorder %v141, 10
  %v1330 = vsel %vm1329, 1, 0
  %v1331 = vcvt.s32.f32 %v1330
  %v1332 = vmul.f32 %v1169, %v1331
  %v1333 = vadd.f32 %v1326, %v1332
  %vm1334 = vcmp.eq.s32.totalorder %v141, 11
  %v1335 = vsel %vm1334, 1, 0
  %v1336 = vcvt.s32.f32 %v1335
  %v1337 = vmul.f32 %v909, %v1336
  %v1338 = vadd.f32 %v1333, %v1337
  %vm1339 = vcmp.eq.s32.totalorder %v141, 12
  %v1340 = vsel %vm1339, 1, 0
  %v1341 = vcvt.s32.f32 %v1340
  %v1342 = vmul.f32 %v1157, %v1341
  %v1343 = vadd.f32 %v1338, %v1342
  %vm1344 = vcmp.eq.s32.totalorder %v141, 13
  %v1345 = vsel %vm1344, 1, 0
  %v1346 = vcvt.s32.f32 %v1345
  %1348 = vset.pattern.permute.xlu0 0
  %1349 = vperm.xlu0 %1348, %v1166
  %v1350 = vpop.permute.xlu0 %1349
  %v1352 = vmul.f32 %v1350, %v1346
  %v1353 = vadd.f32 %v1343, %v1352
  %vm1354 = vcmask 122880
  %1355 = vst.msk [vmem:[%s4] sm:$0x1] %vm1354, %v1353
  // Predicated region
  $region14: #{shapes_trainer_forward.1} parent=0 // pred_check
    _
  $region15: #{shapes_trainer_forward.1} parent=0 // pred_check_branch
    %1357 = sbr.rel (0) target = $region17
  $region16: #{shapes_trainer_forward.1} parent=0 // pred_region
    _
  $region17: #{shapes_trainer_forward.1} parent=0 // pred_fallthru
    _
  // Predicated region
  $region18: #{shapes_trainer_forward.1} parent=0 // pred_check
    _
  $region19: #{shapes_trainer_forward.1} parent=0 // pred_check_branch
    %1359 = sbr.rel (0) target = $region21
  $region20: #{shapes_trainer_forward.1} parent=0 // pred_region
    _
  $region21: #{shapes_trainer_forward.1} parent=0 // pred_fallthru
    _
  // Predicated region
  $region22: #{shapes_trainer_forward.1} parent=0 // pred_check
    _
  $region23: #{shapes_trainer_forward.1} parent=0 // pred_check_branch
    %1361 = sbr.rel (0) target = $region25
  $region24: #{shapes_trainer_forward.1} parent=0 // pred_region
    _
  $region25: #{shapes_trainer_forward.1} parent=0 // pred_fallthru
    _
  // Predicated region
  $region26: #{shapes_trainer_forward.1} parent=0 // pred_check
    _
  $region27: #{shapes_trainer_forward.1} parent=0 // pred_check_branch
    %1363 = sbr.rel (0) target = $region29
  $region28: #{shapes_trainer_forward.1} parent=0 // pred_region
    _
  $region29: #{shapes_trainer_forward.1} parent=0 // pred_fallthru
    _

</llo_original>
